<compile_context>
chip_gen: v7x
topology: tpu7x:2x2x1
jax: 0.10.0
libtpu: 0.0.40
codegen_flags: <defaults>
</compile_context>

<pallas_src>
import functools

import jax
import jax.numpy as jnp
from jax.experimental import pallas as pl
from jax.experimental.pallas import tpu as pltpu

_LANE = 128


# ---------------------------------------------------------------------------
# Small helpers
# ---------------------------------------------------------------------------
def _round_up(x, m):
    return ((x + m - 1) // m) * m


def _pad2(arr, rows, cols):
    r, c = arr.shape
    return jnp.pad(arr, ((0, rows - r), (0, cols - c)))


def _vmem_capacity_bytes():
    try:
        return int(pltpu.get_tpu_info().vmem_capacity_bytes)
    except Exception:
        return 64 * 1024 * 1024          # conservative (v7x-sized) fallback


def _vmem_limit(request_bytes, cap):
    # 2x headroom for double-buffering / compiler temporaries + 8 MiB slack,
    # clipped to 90% of physical VMEM, floored at the 32 MiB default.
    limit = 2 * int(request_bytes) + (8 << 20)
    return int(max(32 << 20, min(limit, int(cap * 0.9))))


# ---------------------------------------------------------------------------
# Kernel 1: fused gridless 4-layer GCN (small graphs, whole problem in VMEM)
# ---------------------------------------------------------------------------
def _gcn2_fused_kernel(a_ref, x_ref,
                       w1_ref, b1_ref, w2_ref, b2_ref,
                       w3_ref, b3_ref, w4_ref, b4_ref,
                       o_ref, *, agg_first):
    def layer(h_bf16, w_ref, b_ref, relu, agg_first_l):
        if agg_first_l:
            # Aggregate on the narrower F_in side first: (A @ H) @ W + b
            ah = jnp.dot(a_ref[...], h_bf16, preferred_element_type=jnp.float32)
            out = jnp.dot(ah.astype(jnp.bfloat16), w_ref[...],
                          preferred_element_type=jnp.float32) + b_ref[...]
        else:
            # Transform first: A @ (H @ W) + b
            xw = jnp.dot(h_bf16, w_ref[...], preferred_element_type=jnp.float32)
            out = jnp.dot(a_ref[...], xw.astype(jnp.bfloat16),
                          preferred_element_type=jnp.float32) + b_ref[...]
        if relu:
            out = jnp.maximum(out, 0.0)
        return out

    h = layer(x_ref[...], w1_ref, b1_ref, True, agg_first[0]).astype(jnp.bfloat16)
    h = layer(h, w2_ref, b2_ref, True, agg_first[1]).astype(jnp.bfloat16)
    h = layer(h, w3_ref, b3_ref, True, agg_first[2]).astype(jnp.bfloat16)
    o_ref[...] = layer(h, w4_ref, b4_ref, False, agg_first[3])   # f32 logits


# ---------------------------------------------------------------------------
# Kernels for the row-tiled path (larger graphs): A streamed as row blocks.
# ---------------------------------------------------------------------------
def _feature_transform_kernel(h_ref, w_ref, xw_ref):
    # XW = H @ W, computed ONCE per layer (not per row tile), stored bf16.
    xw_ref[...] = jnp.dot(h_ref[...], w_ref[...],
                          preferred_element_type=jnp.float32).astype(jnp.bfloat16)


def _agg_last_row_kernel(a_ref, xw_ref, b_ref, o_ref, *, relu):
    # out_tile = A_tile @ XW + b   (XW, b VMEM-resident; A_tile streamed)
    out = jnp.dot(a_ref[...], xw_ref[...],
                  preferred_element_type=jnp.float32) + b_ref[...]
    if relu:
        out = jnp.maximum(out, 0.0)
    o_ref[...] = out.astype(o_ref.dtype)


def _agg_first_row_kernel(a_ref, h_ref, w_ref, b_ref, o_ref, *, relu):
    # out_tile = (A_tile @ H) @ W + b   (H, W, b VMEM-resident; A_tile streamed)
    ah = jnp.dot(a_ref[...], h_ref[...], preferred_element_type=jnp.float32)
    out = jnp.dot(ah.astype(jnp.bfloat16), w_ref[...],
                  preferred_element_type=jnp.float32) + b_ref[...]
    if relu:
        out = jnp.maximum(out, 0.0)
    o_ref[...] = out.astype(o_ref.dtype)


def _tiled_layer(a_p, h_bf16, w_p, b_p, *, relu, agg_first, tm, vmem_cap):
    n_pad = a_p.shape[0]
    f_in, f_out = w_p.shape
    grid = (n_pad // tm,)
    out_dtype = jnp.bfloat16 if relu else jnp.float32
    out_isize = 2 if relu else 4

    a_spec = pl.BlockSpec((tm, n_pad), lambda i: (i, 0))      # streamed row tiles
    b_spec = pl.BlockSpec((1, f_out), lambda i: (0, 0))       # resident
    out_spec = pl.BlockSpec((tm, f_out), lambda i: (i, 0))

    a_blk = 2 * tm * n_pad * 2
    out_blk = 2 * tm * f_out * out_isize

    if agg_first:
        kernel = functools.partial(_agg_first_row_kernel, relu=relu)
        in_specs = [a_spec,
                    pl.BlockSpec((n_pad, f_in), lambda i: (0, 0)),   # H resident
                    pl.BlockSpec((f_in, f_out), lambda i: (0, 0)),   # W resident
                    b_spec]
        operands = (a_p, h_bf16, w_p, b_p)
        resident = 2 * (n_pad * f_in * 2 + f_in * f_out * 2 + f_out * 4)
        interm = tm * f_in * 4 + tm * f_out * 4
    else:
        # Feature transform once per layer (tiny gridless kernel).
        xw = pl.pallas_call(
            _feature_transform_kernel,
            out_shape=jax.ShapeDtypeStruct((n_pad, f_out), jnp.bfloat16),
            in_specs=[pl.BlockSpec(memory_space=pltpu.MemorySpace.VMEM)] * 2,
            out_specs=pl.BlockSpec(memory_space=pltpu.MemorySpace.VMEM),
            compiler_params=pltpu.CompilerParams(
                vmem_limit_bytes=_vmem_limit(
                    n_pad * f_in * 2 + f_in * f_out * 2
                    + n_pad * f_out * (2 + 4), vmem_cap)),
        )(h_bf16, w_p)
        kernel = functools.partial(_agg_last_row_kernel, relu=relu)
        in_specs = [a_spec,
                    pl.BlockSpec((n_pad, f_out), lambda i: (0, 0)),  # XW resident
                    b_spec]
        operands = (a_p, xw, b_p)
        resident = 2 * (n_pad * f_out * 2 + f_out * 4)
        interm = tm * f_out * 4

    return pl.pallas_call(
        kernel,
        out_shape=jax.ShapeDtypeStruct((n_pad, f_out), out_dtype),
        grid=grid,
        in_specs=in_specs,
        out_specs=out_spec,
        compiler_params=pltpu.CompilerParams(
            dimension_semantics=("parallel",),   # shard row tiles across TCs (v7x)
            vmem_limit_bytes=_vmem_limit(a_blk + out_blk + resident + interm,
                                         vmem_cap)),
    )(*operands)


# ---------------------------------------------------------------------------
# Builder: pre-pads/casts weights once, derives static config, returns a
# jittable forward plus a one-time-per-graph prepare function.
# ---------------------------------------------------------------------------
def build_gcn2_forward(params, num_nodes, *, force_tiled=None):
    n_pad = _round_up(max(num_nodes, _LANE), _LANE)
    dims = [params[0][0].shape[0]] + [w.shape[1] for (w, _) in params]
    dims_pad = [_round_up(d, _LANE) for d in dims]
    num_classes = dims[-1]
    n_layers = len(params)

    # Per-layer association: aggregate on the narrower operand side.
    agg_first = tuple(dims_pad[i] < dims_pad[i + 1] for i in range(n_layers))

    # Hoisted parameter prep (done once, not per forward call).
    padded_params = []
    for i, (w, b) in enumerate(params):
        w_p = _pad2(w, dims_pad[i], dims_pad[i + 1]).astype(jnp.bfloat16)
        b_p = _pad2(b, 1, dims_pad[i + 1]).astype(jnp.float32)
        padded_params.append((w_p, b_p))

    vmem_cap = _vmem_capacity_bytes()
    w_bytes = sum(2 * dims_pad[i] * dims_pad[i + 1] + 4 * dims_pad[i + 1]
                  for i in range(n_layers))
    resident_fp = (2 * n_pad * n_pad            # A_hat bf16
                   + 2 * n_pad * dims_pad[0]    # X bf16
                   + w_bytes                    # weights/biases
                   + 4 * n_pad * max(dims_pad)  # largest f32 intermediate
                   + 4 * n_pad * dims_pad[-1])  # f32 output
    tiled = (resident_fp > vmem_cap // 3) if force_tiled is None else bool(force_tiled)
    tm = 256 if (n_pad % 256 == 0) else 128     # 256-row M blocks for v6e/v7x MXU
    fused_vmem = _vmem_limit(resident_fp, vmem_cap)

    def prepare_graph(x, a_hat):
        """One-time per-graph padding + bf16 cast (hoisted out of the hot path)."""
        x_p = _pad2(x, n_pad, dims_pad[0]).astype(jnp.bfloat16)
        a_p = _pad2(a_hat, n_pad, n_pad).astype(jnp.bfloat16)
        return x_p, a_p

    if not tiled:
        def forward(padded_params, x_p, a_p):
            flat = [a_p, x_p]
            for (w_p, b_p) in padded_params:
                flat += [w_p, b_p]
            out_pad = pl.pallas_call(
                functools.partial(_gcn2_fused_kernel, agg_first=agg_first),
                out_shape=jax.ShapeDtypeStruct((n_pad, dims_pad[-1]), jnp.float32),
                in_specs=[pl.BlockSpec(memory_space=pltpu.MemorySpace.VMEM)] * len(flat),
                out_specs=pl.BlockSpec(memory_space=pltpu.MemorySpace.VMEM),
                compiler_params=pltpu.CompilerParams(vmem_limit_bytes=fused_vmem),
            )(*flat)
            return out_pad[:num_nodes, :num_classes]
    else:
        def forward(padded_params, x_p, a_p):
            h = x_p
            for li, (w_p, b_p) in enumerate(padded_params):
                h = _tiled_layer(a_p, h, w_p, b_p,
                                 relu=(li < n_layers - 1),
                                 agg_first=agg_first[li],
                                 tm=tm, vmem_cap=vmem_cap)
            return h[:num_nodes, :num_classes].astype(jnp.float32)

    return prepare_graph, forward, padded_params, agg_first


# ---------------------------------------------------------------------------
# Graph glue: A_hat = D^{-1/2} (A + I) D^{-1/2}   (PyG GCNConv normalization).
# Computed once per graph on the UNPADDED node set.
# ---------------------------------------------------------------------------
def build_normalized_adjacency(edge_index, num_nodes):
    src, dst = edge_index[0], edge_index[1]
    a = jnp.zeros((num_nodes, num_nodes), jnp.float32)
    a = a.at[dst, src].add(1.0)                    # A[i, j] += 1 per edge j -> i
    a = a + jnp.eye(num_nodes, dtype=jnp.float32)  # self loops
    deg = a.sum(axis=1)
    d_inv_sqrt = jnp.where(deg > 0, 1.0 / jnp.sqrt(deg), 0.0)
    return d_inv_sqrt[:, None] * a * d_inv_sqrt[None, :]


# ---------------------------------------------------------------------------
# Parameter init (Glorot-uniform weights like PyG; small biases to exercise
# the bias-add path).
# ---------------------------------------------------------------------------
def init_gcn2_params(key, num_features, num_classes):
    dims = [num_features, 200, 100, 40, num_classes]
    params = []
    for i in range(4):
        key, wk, bk = jax.random.split(key, 3)
        fan_in, fan_out = dims[i], dims[i + 1]
        limit = jnp.sqrt(6.0 / (fan_in + fan_out))
        w = jax.random.uniform(wk, (fan_in, fan_out), jnp.float32,
                               minval=-limit, maxval=limit)
        b = jax.random.uniform(bk, (1, fan_out), jnp.float32,
                               minval=-0.05, maxval=0.05)
        params.append((w, b))
    return params


# ---------------------------------------------------------------------------
# Pure-JAX references.
#   * bf16-ops reference mirrors the kernel's exact numerical recipe,
#     including the per-layer matmul-association choice.
#   * f32 reference is the full-precision module semantics.
# ---------------------------------------------------------------------------
def gcn2_forward_ref_bf16ops(params, x, a_hat, agg_first):
    def bf(v):
        return v.astype(jnp.bfloat16).astype(jnp.float32)

    a = bf(a_hat)
    h = bf(x)
    for li, (w, b) in enumerate(params):
        w32 = bf(w)
        if agg_first[li]:
            ah = bf(a @ h)
            h = ah @ w32 + b
        else:
            xw = bf(h @ w32)
            h = a @ xw + b
        if li < len(params) - 1:
            h = jnp.maximum(h, 0.0)
            h = bf(h)
    return h


def gcn2_forward_ref_f32(params, x, a_hat):
    h = x
    for li, (w, b) in enumerate(params):
        h = a_hat @ (h @ w) + b
        if li < len(params) - 1:
            h = jnp.maximum(h, 0.0)
    return h


# TODO(synk): dropout(p=0.5, training=True) omitted — inference-mode forward.


if __name__ == "__main__":
    key = jax.random.PRNGKey(0)
    num_features, num_classes = 32, 3
    k_small, k_big, k_p = jax.random.split(key, 3)
    params = init_gcn2_params(k_p, num_features, num_classes)

    def make_graph(gkey, num_nodes, num_edges):
        k_x, k_e1, k_e2 = jax.random.split(gkey, 3)
        x = jax.random.normal(k_x, (num_nodes, num_features), jnp.float32)
        # Row-normalize features (NormalizeFeatures transform analogue).
        x = x / jnp.maximum(jnp.abs(x).sum(axis=1, keepdims=True), 1e-12)
        src = jax.random.randint(k_e1, (num_edges,), 0, num_nodes)
        dst = jax.random.randint(k_e2, (num_edges,), 0, num_nodes)
        return x, jnp.stack([src, dst], axis=0)

    def run_case(gkey, num_nodes, num_edges, force_tiled):
        x, edge_index = make_graph(gkey, num_nodes, num_edges)
        a_hat = build_normalized_adjacency(edge_index, num_nodes)
        prepare_graph, forward, padded_params, agg_first = build_gcn2_forward(
            params, num_nodes, force_tiled=force_tiled)
        x_p, a_p = prepare_graph(x, a_hat)           # one-time graph prep
        fwd = jax.jit(forward)
        out = jax.block_until_ready(fwd(padded_params, x_p, a_p))
        assert out.shape == (num_nodes, num_classes)

        ref_bf16 = gcn2_forward_ref_bf16ops(params, x, a_hat, agg_first)
        ref_f32 = gcn2_forward_ref_f32(params, x, a_hat)
        err_tight = float(jnp.max(jnp.abs(out - ref_bf16)))
        err_loose = float(jnp.max(jnp.abs(out - ref_f32)))
        assert err_tight < 5e-3, f"kernel vs bf16-op reference mismatch: {err_tight}"
        assert err_loose < 5e-2, f"kernel vs f32 reference mismatch: {err_loose}"

    # Small graph (N_pad = 128): fused gridless kernel — latency-bound regime.
    run_case(k_small, num_nodes=64, num_edges=128, force_tiled=False)
    # Larger graph (N_pad = 768, TM = 256, grid = (3,)): row-tiled,
    # auto-pipelined, megacore-parallel path.
    run_case(k_big, num_nodes=700, num_edges=2800, force_tiled=True)

    print("KERNEL_OK")
</pallas_src>

<mosaic_0001>
module attributes {stable_mosaic.version = 11 : i64} {
  func.func @_gcn2_fused_kernel(%arg0: memref<128x128xbf16, #tpu.memory_space<vmem>>, %arg1: memref<128x128xbf16, #tpu.memory_space<vmem>>, %arg2: memref<128x256xbf16, #tpu.memory_space<vmem>>, %arg3: memref<1x256xf32, #tpu.memory_space<vmem>>, %arg4: memref<256x128xbf16, #tpu.memory_space<vmem>>, %arg5: memref<1x128xf32, #tpu.memory_space<vmem>>, %arg6: memref<128x128xbf16, #tpu.memory_space<vmem>>, %arg7: memref<1x128xf32, #tpu.memory_space<vmem>>, %arg8: memref<128x128xbf16, #tpu.memory_space<vmem>>, %arg9: memref<1x128xf32, #tpu.memory_space<vmem>>, %arg10: memref<128x128xf32, #tpu.memory_space<vmem>>) attributes {dimension_semantics = [], scalar_prefetch = 0 : i64, scratch_operands = 0 : i64, tpu.core_type = #tpu.core_type<tc>} {
    %c0 = arith.constant 0 : index
    %c0_0 = arith.constant 0 : index
    %0 = vector.load %arg1[%c0, %c0_0] : memref<128x128xbf16, #tpu.memory_space<vmem>>, vector<128x128xbf16>
    %c0_1 = arith.constant 0 : index
    %c0_2 = arith.constant 0 : index
    %1 = vector.load %arg0[%c0_1, %c0_2] : memref<128x128xbf16, #tpu.memory_space<vmem>>, vector<128x128xbf16>
    %cst = arith.constant dense<0.000000e+00> : vector<128x128xf32>
    %2 = tpu.matmul %1, %0, %cst {dimension_numbers = #tpu.dot_dimension_numbers<[1], [0], [0], [1], [0, 0, 1, 1], [], []>} : vector<128x128xbf16>, vector<128x128xbf16>, vector<128x128xf32> -> vector<128x128xf32>
    %3 = arith.truncf %2 : vector<128x128xf32> to vector<128x128xbf16>
    %c0_3 = arith.constant 0 : index
    %c0_4 = arith.constant 0 : index
    %4 = vector.load %arg2[%c0_3, %c0_4] : memref<128x256xbf16, #tpu.memory_space<vmem>>, vector<128x256xbf16>
    %cst_5 = arith.constant dense<0.000000e+00> : vector<128x256xf32>
    %5 = tpu.matmul %3, %4, %cst_5 {dimension_numbers = #tpu.dot_dimension_numbers<[1], [0], [0], [1], [0, 0, 1, 1], [], []>} : vector<128x128xbf16>, vector<128x256xbf16>, vector<128x256xf32> -> vector<128x256xf32>
    %c0_6 = arith.constant 0 : index
    %c0_7 = arith.constant 0 : index
    %6 = vector.load %arg3[%c0_6, %c0_7] : memref<1x256xf32, #tpu.memory_space<vmem>>, vector<1x256xf32>
    %7 = vector.broadcast %6 : vector<1x256xf32> to vector<128x256xf32>
    %8 = arith.addf %5, %7 : vector<128x256xf32>
    %cst_8 = arith.constant 0.000000e+00 : f32
    %9 = vector.broadcast %cst_8 : f32 to vector<128x256xf32>
    %10 = arith.maximumf %8, %9 : vector<128x256xf32>
    %11 = arith.truncf %10 : vector<128x256xf32> to vector<128x256xbf16>
    %c0_9 = arith.constant 0 : index
    %c0_10 = arith.constant 0 : index
    %12 = vector.load %arg4[%c0_9, %c0_10] : memref<256x128xbf16, #tpu.memory_space<vmem>>, vector<256x128xbf16>
    %cst_11 = arith.constant dense<0.000000e+00> : vector<128x128xf32>
    %13 = tpu.matmul %11, %12, %cst_11 {dimension_numbers = #tpu.dot_dimension_numbers<[1], [0], [0], [1], [0, 0, 1, 1], [], []>} : vector<128x256xbf16>, vector<256x128xbf16>, vector<128x128xf32> -> vector<128x128xf32>
    %c0_12 = arith.constant 0 : index
    %c0_13 = arith.constant 0 : index
    %14 = vector.load %arg0[%c0_12, %c0_13] : memref<128x128xbf16, #tpu.memory_space<vmem>>, vector<128x128xbf16>
    %15 = arith.truncf %13 : vector<128x128xf32> to vector<128x128xbf16>
    %cst_14 = arith.constant dense<0.000000e+00> : vector<128x128xf32>
    %16 = tpu.matmul %14, %15, %cst_14 {dimension_numbers = #tpu.dot_dimension_numbers<[1], [0], [0], [1], [0, 0, 1, 1], [], []>} : vector<128x128xbf16>, vector<128x128xbf16>, vector<128x128xf32> -> vector<128x128xf32>
    %c0_15 = arith.constant 0 : index
    %c0_16 = arith.constant 0 : index
    %17 = vector.load %arg5[%c0_15, %c0_16] : memref<1x128xf32, #tpu.memory_space<vmem>>, vector<1x128xf32>
    %18 = vector.broadcast %17 : vector<1x128xf32> to vector<128x128xf32>
    %19 = arith.addf %16, %18 : vector<128x128xf32>
    %cst_17 = arith.constant 0.000000e+00 : f32
    %20 = vector.broadcast %cst_17 : f32 to vector<128x128xf32>
    %21 = arith.maximumf %19, %20 : vector<128x128xf32>
    %22 = arith.truncf %21 : vector<128x128xf32> to vector<128x128xbf16>
    %c0_18 = arith.constant 0 : index
    %c0_19 = arith.constant 0 : index
    %23 = vector.load %arg6[%c0_18, %c0_19] : memref<128x128xbf16, #tpu.memory_space<vmem>>, vector<128x128xbf16>
    %cst_20 = arith.constant dense<0.000000e+00> : vector<128x128xf32>
    %24 = tpu.matmul %22, %23, %cst_20 {dimension_numbers = #tpu.dot_dimension_numbers<[1], [0], [0], [1], [0, 0, 1, 1], [], []>} : vector<128x128xbf16>, vector<128x128xbf16>, vector<128x128xf32> -> vector<128x128xf32>
    %c0_21 = arith.constant 0 : index
    %c0_22 = arith.constant 0 : index
    %25 = vector.load %arg0[%c0_21, %c0_22] : memref<128x128xbf16, #tpu.memory_space<vmem>>, vector<128x128xbf16>
    %26 = arith.truncf %24 : vector<128x128xf32> to vector<128x128xbf16>
    %cst_23 = arith.constant dense<0.000000e+00> : vector<128x128xf32>
    %27 = tpu.matmul %25, %26, %cst_23 {dimension_numbers = #tpu.dot_dimension_numbers<[1], [0], [0], [1], [0, 0, 1, 1], [], []>} : vector<128x128xbf16>, vector<128x128xbf16>, vector<128x128xf32> -> vector<128x128xf32>
    %c0_24 = arith.constant 0 : index
    %c0_25 = arith.constant 0 : index
    %28 = vector.load %arg7[%c0_24, %c0_25] : memref<1x128xf32, #tpu.memory_space<vmem>>, vector<1x128xf32>
    %29 = vector.broadcast %28 : vector<1x128xf32> to vector<128x128xf32>
    %30 = arith.addf %27, %29 : vector<128x128xf32>
    %cst_26 = arith.constant 0.000000e+00 : f32
    %31 = vector.broadcast %cst_26 : f32 to vector<128x128xf32>
    %32 = arith.maximumf %30, %31 : vector<128x128xf32>
    %33 = arith.truncf %32 : vector<128x128xf32> to vector<128x128xbf16>
    %c0_27 = arith.constant 0 : index
    %c0_28 = arith.constant 0 : index
    %34 = vector.load %arg8[%c0_27, %c0_28] : memref<128x128xbf16, #tpu.memory_space<vmem>>, vector<128x128xbf16>
    %cst_29 = arith.constant dense<0.000000e+00> : vector<128x128xf32>
    %35 = tpu.matmul %33, %34, %cst_29 {dimension_numbers = #tpu.dot_dimension_numbers<[1], [0], [0], [1], [0, 0, 1, 1], [], []>} : vector<128x128xbf16>, vector<128x128xbf16>, vector<128x128xf32> -> vector<128x128xf32>
    %c0_30 = arith.constant 0 : index
    %c0_31 = arith.constant 0 : index
    %36 = vector.load %arg0[%c0_30, %c0_31] : memref<128x128xbf16, #tpu.memory_space<vmem>>, vector<128x128xbf16>
    %37 = arith.truncf %35 : vector<128x128xf32> to vector<128x128xbf16>
    %cst_32 = arith.constant dense<0.000000e+00> : vector<128x128xf32>
    %38 = tpu.matmul %36, %37, %cst_32 {dimension_numbers = #tpu.dot_dimension_numbers<[1], [0], [0], [1], [0, 0, 1, 1], [], []>} : vector<128x128xbf16>, vector<128x128xbf16>, vector<128x128xf32> -> vector<128x128xf32>
    %c0_33 = arith.constant 0 : index
    %c0_34 = arith.constant 0 : index
    %39 = vector.load %arg9[%c0_33, %c0_34] : memref<1x128xf32, #tpu.memory_space<vmem>>, vector<1x128xf32>
    %40 = vector.broadcast %39 : vector<1x128xf32> to vector<128x128xf32>
    %41 = arith.addf %38, %40 : vector<128x128xf32>
    %c0_35 = arith.constant 0 : index
    %c0_36 = arith.constant 0 : index
    %42 = vector.load %arg10[%c0_35, %c0_36] : memref<128x128xf32, #tpu.memory_space<vmem>>, vector<128x128xf32>
    tpu.vector_store %arg10[%c0_35, %c0_36], %41 {strides = array<i32>} : memref<128x128xf32, #tpu.memory_space<vmem>>, vector<128x128xf32>,
    return
  }
}

</mosaic_0001>

<llo_original>
// kernel: forward.1
$region0: #{forward.1}
  #allocation0 [shape = 'u32[]', space=smem, size = 0x4, offset = 0x4, fixed_abs, tag = 'smem constant byte address 0x4 - core index']
  #allocation1 [shape = 'u32[144,128]{1,0:T(1,128)}', space=vmem, size = 0x12000, scoped, tag = 'internal scratch']
  %s0 = inlined_call_operand.hbm [shape: bf16[128,128], index: 0, kind: input, shape index: {}]
  %s1 = inlined_call_operand.hbm [shape: bf16[128,128], index: 1, kind: input, shape index: {}]
  %s2 = inlined_call_operand.hbm [shape: bf16[128,256], index: 2, kind: input, shape index: {}]
  %s3 = inlined_call_operand.vmem [shape: f32[1,256], index: 3, kind: input, shape index: {}]
  %s4 = inlined_call_operand.hbm [shape: bf16[256,128], index: 4, kind: input, shape index: {}]
  %s5 = inlined_call_operand.vmem [shape: f32[1,128], index: 5, kind: input, shape index: {}]
  %s6 = inlined_call_operand.hbm [shape: bf16[128,128], index: 6, kind: input, shape index: {}]
  %s7 = inlined_call_operand.vmem [shape: f32[1,128], index: 7, kind: input, shape index: {}]
  %s8 = inlined_call_operand.hbm [shape: bf16[128,128], index: 8, kind: input, shape index: {}]
  %s9 = inlined_call_operand.vmem [shape: f32[1,128], index: 9, kind: input, shape index: {}]
  %s10 = inlined_call_operand.vmem [shape: f32[128,128], index: 10, kind: output, shape index: {}]
  %s11 = sld [smem:[#allocation0]]
  $region74: #{forward.1} parent=0
    _
  %s13 = ssub.s32 1, %s11
  %s14 = scalar_select 0, %s13, %s11
  $region1: #{forward.1} parent=0
    #allocation2 [shape = 'u8[32768]{0}', space=vmem, size = 0x8000, scoped, tag = 'input window, operand 0, single buffered']
    #allocation3 [shape = 's32[1]{0}', space=sflag, size = 0x4, scoped, tag = 'scoped memory for forward.1']
    #allocation4 [shape = 'u8[32768]{0}', space=vmem, size = 0x8000, scoped, tag = 'input window, operand 1, single buffered']
    #allocation5 [shape = 's32[1]{0}', space=sflag, size = 0x4, scoped, tag = 'scoped memory for forward.1']
    #allocation6 [shape = 'u8[65536]{0}', space=vmem, size = 0x10000, scoped, tag = 'input window, operand 2, single buffered']
    #allocation7 [shape = 'u8[65536]{0}', space=vmem, size = 0x10000, scoped, tag = 'input window, operand 4, single buffered']
    #allocation8 [shape = 's32[1]{0}', space=sflag, size = 0x4, scoped, tag = 'scoped memory for forward.1']
    #allocation9 [shape = 'u8[32768]{0}', space=vmem, size = 0x8000, scoped, tag = 'input window, operand 6, single buffered']
    #allocation10 [shape = 'u8[32768]{0}', space=vmem, size = 0x8000, scoped, tag = 'input window, operand 8, single buffered']
    #allocation11 [shape = 's32[1]{0}', space=sflag, size = 0x4, scoped, tag = 'scoped memory for forward.1']
    %15 = vsyncpa [#allocation3], 0
    %16 = vsyncpa [#allocation5], 0
    %17 = vsyncpa [#allocation8], 0
    %18 = vsyncpa [#allocation11], 0
    // Predicated region
    $region2: #{forward.1} parent=1 // pred_check
      _
    $region3: #{forward.1} parent=1 // pred_check_branch
      %20 = sbr.rel (0) target = $region5
    $region4: #{forward.1} parent=1 // pred_region
      %s22 = ssub.s32 1024, 1024
      %23 = vsyncadd [#allocation3], %s22
      %s24 = sshll.u32 [#allocation2], 4
      %s25 = int_to_ptr.vmem [resolvable:$true] %s24
      %30 = dma.hbm_to_vmem [thread:$0]  %s0, 1024, %s25, [#allocation3], 64, 64, 4
    $region5: #{forward.1} parent=1 // pred_fallthru
      _
    // Predicated region
    $region6: #{forward.1} parent=1 // pred_check
      _
    $region7: #{forward.1} parent=1 // pred_check_branch
      %32 = sbr.rel (0) target = $region9
    $region8: #{forward.1} parent=1 // pred_region
      %s34 = ssub.s32 1024, 1024
      %35 = vsyncadd [#allocation5], %s34
      %s36 = sshll.u32 [#allocation4], 4
      %s37 = int_to_ptr.vmem [resolvable:$true] %s36
      %42 = dma.hbm_to_vmem [thread:$0]  %s1, 1024, %s37, [#allocation5], 64, 64, 4
    $region9: #{forward.1} parent=1 // pred_fallthru
      _
    // Predicated region
    $region10: #{forward.1} parent=1 // pred_check
      _
    $region11: #{forward.1} parent=1 // pred_check_branch
      %44 = sbr.rel (0) target = $region13
    $region12: #{forward.1} parent=1 // pred_region
      %s46 = ssub.s32 2048, 2048
      %47 = vsyncadd [#allocation5], %s46
      %s48 = sshll.u32 [#allocation6], 4
      %s49 = int_to_ptr.vmem [resolvable:$true] %s48
      %54 = dma.hbm_to_vmem [thread:$0]  %s2, 2048, %s49, [#allocation5], 128, 128, 8
    $region13: #{forward.1} parent=1 // pred_fallthru
      _
    // Predicated region
    $region14: #{forward.1} parent=1 // pred_check
      _
    $region15: #{forward.1} parent=1 // pred_check_branch
      %56 = sbr.rel (0) target = $region17
    $region16: #{forward.1} parent=1 // pred_region
      _
    $region17: #{forward.1} parent=1 // pred_fallthru
      _
    // Predicated region
    $region18: #{forward.1} parent=1 // pred_check
      _
    $region19: #{forward.1} parent=1 // pred_check_branch
      %58 = sbr.rel (0) target = $region21
    $region20: #{forward.1} parent=1 // pred_region
      %s60 = ssub.s32 2048, 2048
      %61 = vsyncadd [#allocation8], %s60
      %s62 = sshll.u32 [#allocation7], 4
      %s63 = int_to_ptr.vmem [resolvable:$true] %s62
      %68 = dma.hbm_to_vmem [thread:$0]  %s4, 2048, %s63, [#allocation8], 64, 64, 4
    $region21: #{forward.1} parent=1 // pred_fallthru
      _
    // Predicated region
    $region22: #{forward.1} parent=1 // pred_check
      _
    $region23: #{forward.1} parent=1 // pred_check_branch
      %70 = sbr.rel (0) target = $region25
    $region24: #{forward.1} parent=1 // pred_region
      _
    $region25: #{forward.1} parent=1 // pred_fallthru
      _
    // Predicated region
    $region26: #{forward.1} parent=1 // pred_check
      _
    $region27: #{forward.1} parent=1 // pred_check_branch
      %72 = sbr.rel (0) target = $region29
    $region28: #{forward.1} parent=1 // pred_region
      %s74 = ssub.s32 1024, 1024
      %75 = vsyncadd [#allocation8], %s74
      %s76 = sshll.u32 [#allocation9], 4
      %s77 = int_to_ptr.vmem [resolvable:$true] %s76
      %82 = dma.hbm_to_vmem [thread:$0]  %s6, 1024, %s77, [#allocation8], 64, 64, 4
    $region29: #{forward.1} parent=1 // pred_fallthru
      _
    // Predicated region
    $region30: #{forward.1} parent=1 // pred_check
      _
    $region31: #{forward.1} parent=1 // pred_check_branch
      %84 = sbr.rel (0) target = $region33
    $region32: #{forward.1} parent=1 // pred_region
      _
    $region33: #{forward.1} parent=1 // pred_fallthru
      _
    // Predicated region
    $region34: #{forward.1} parent=1 // pred_check
      _
    $region35: #{forward.1} parent=1 // pred_check_branch
      %86 = sbr.rel (0) target = $region37
    $region36: #{forward.1} parent=1 // pred_region
      %s88 = ssub.s32 1024, 1024
      %89 = vsyncadd [#allocation11], %s88
      %s90 = sshll.u32 [#allocation10], 4
      %s91 = int_to_ptr.vmem [resolvable:$true] %s90
      %96 = dma.hbm_to_vmem [thread:$0]  %s8, 1024, %s91, [#allocation11], 64, 64, 4
    $region37: #{forward.1} parent=1 // pred_fallthru
      _
    // Predicated region
    $region38: #{forward.1} parent=1 // pred_check
      _
    $region39: #{forward.1} parent=1 // pred_check_branch
      %98 = sbr.rel (0) target = $region41
    $region40: #{forward.1} parent=1 // pred_region
      _
    $region41: #{forward.1} parent=1 // pred_fallthru
      _
    // Predicated region
    $region42: #{forward.1} parent=1 // pred_check
      _
    $region43: #{forward.1} parent=1 // pred_check_branch
      %100 = sbr.rel (0) target = $region45
    $region44: #{forward.1} parent=1 // pred_region
      %101 = dma.done [#allocation3], 1024
    $region45: #{forward.1} parent=1 // pred_fallthru
      _
    // Predicated region
    $region46: #{forward.1} parent=1 // pred_check
      _
    $region47: #{forward.1} parent=1 // pred_check_branch
      %103 = sbr.rel (0) target = $region49
    $region48: #{forward.1} parent=1 // pred_region
      %104 = dma.done [#allocation5], 1024
    $region49: #{forward.1} parent=1 // pred_fallthru
      _
    // Predicated region
    $region50: #{forward.1} parent=1 // pred_check
      _
    $region51: #{forward.1} parent=1 // pred_check_branch
      %106 = sbr.rel (0) target = $region53
    $region52: #{forward.1} parent=1 // pred_region
      %107 = dma.done [#allocation5], 2048
    $region53: #{forward.1} parent=1 // pred_fallthru
      _
    // Predicated region
    $region54: #{forward.1} parent=1 // pred_check
      _
    $region55: #{forward.1} parent=1 // pred_check_branch
      %109 = sbr.rel (0) target = $region57
    $region56: #{forward.1} parent=1 // pred_region
      %110 = dma.done [#allocation8], 2048
    $region57: #{forward.1} parent=1 // pred_fallthru
      _
    // Predicated region
    $region58: #{forward.1} parent=1 // pred_check
      _
    $region59: #{forward.1} parent=1 // pred_check_branch
      %112 = sbr.rel (0) target = $region61
    $region60: #{forward.1} parent=1 // pred_region
      %113 = dma.done [#allocation8], 1024
    $region61: #{forward.1} parent=1 // pred_fallthru
      _
    // Predicated region
    $region62: #{forward.1} parent=1 // pred_check
      _
    $region63: #{forward.1} parent=1 // pred_check_branch
      %115 = sbr.rel (0) target = $region65
    $region64: #{forward.1} parent=1 // pred_region
      %116 = dma.done [#allocation11], 1024
    $region65: #{forward.1} parent=1 // pred_fallthru
      _
    %v118 = vld [vmem:[#allocation4] sm:$0xf]
    %v119 = vld [vmem:[#allocation4 + $0x4] sm:$0xf]
    %v120 = vld [vmem:[#allocation4 + $0x8] sm:$0xf]
    %v121 = vld [vmem:[#allocation4 + $0xc] sm:$0xf]
    %v122 = vld [vmem:[#allocation4 + $0x10] sm:$0xf]
    %v123 = vld [vmem:[#allocation4 + $0x14] sm:$0xf]
    %v124 = vld [vmem:[#allocation4 + $0x18] sm:$0xf]
    %v125 = vld [vmem:[#allocation4 + $0x1c] sm:$0xf]
    %v126 = vld [vmem:[#allocation4 + $0x20] sm:$0xf]
    %v127 = vld [vmem:[#allocation4 + $0x24] sm:$0xf]
    %v128 = vld [vmem:[#allocation4 + $0x28] sm:$0xf]
    %v129 = vld [vmem:[#allocation4 + $0x2c] sm:$0xf]
    %v130 = vld [vmem:[#allocation4 + $0x30] sm:$0xf]
    %v131 = vld [vmem:[#allocation4 + $0x34] sm:$0xf]
    %v132 = vld [vmem:[#allocation4 + $0x38] sm:$0xf]
    %v133 = vld [vmem:[#allocation4 + $0x3c] sm:$0xf]
    %v134 = vld [vmem:[#allocation2] sm:$0xf]
    %v135 = vld [vmem:[#allocation2 + $0x4] sm:$0xf]
    %v136 = vld [vmem:[#allocation2 + $0x8] sm:$0xf]
    %v137 = vld [vmem:[#allocation2 + $0xc] sm:$0xf]
    %v138 = vld [vmem:[#allocation2 + $0x10] sm:$0xf]
    %v139 = vld [vmem:[#allocation2 + $0x14] sm:$0xf]
    %v140 = vld [vmem:[#allocation2 + $0x18] sm:$0xf]
    %v141 = vld [vmem:[#allocation2 + $0x1c] sm:$0xf]
    %v142 = vld [vmem:[#allocation2 + $0x20] sm:$0xf]
    %v143 = vld [vmem:[#allocation2 + $0x24] sm:$0xf]
    %v144 = vld [vmem:[#allocation2 + $0x28] sm:$0xf]
    %v145 = vld [vmem:[#allocation2 + $0x2c] sm:$0xf]
    %v146 = vld [vmem:[#allocation2 + $0x30] sm:$0xf]
    %v147 = vld [vmem:[#allocation2 + $0x34] sm:$0xf]
    %v148 = vld [vmem:[#allocation2 + $0x38] sm:$0xf]
    %v149 = vld [vmem:[#allocation2 + $0x3c] sm:$0xf]
    %v166 = vunpack.c.l.b16 %v134
    %v167 = vunpack.c.l.b16 %v135
    %v168 = vunpack.c.l.b16 %v136
    %v169 = vunpack.c.l.b16 %v137
    %v170 = vunpack.c.l.b16 %v138
    %v171 = vunpack.c.l.b16 %v139
    %v172 = vunpack.c.l.b16 %v140
    %v173 = vunpack.c.l.b16 %v141
    %v174 = vunpack.c.l.b16 %v142
    %v175 = vunpack.c.l.b16 %v143
    %v176 = vunpack.c.l.b16 %v144
    %v177 = vunpack.c.l.b16 %v145
    %v178 = vunpack.c.l.b16 %v146
    %v179 = vunpack.c.l.b16 %v147
    %v180 = vunpack.c.l.b16 %v148
    %v181 = vunpack.c.l.b16 %v149
    %v182 = vpack.c.b16 %v167, %v166
    %v183 = vpack.c.b16 %v169, %v168
    %v184 = vpack.c.b16 %v171, %v170
    %v185 = vpack.c.b16 %v173, %v172
    %v186 = vpack.c.b16 %v175, %v174
    %v187 = vpack.c.b16 %v177, %v176
    %v188 = vpack.c.b16 %v179, %v178
    %v189 = vpack.c.b16 %v181, %v180
    %v214 = vunpack.c.l.b16 %v118
    %v215 = vunpack.c.l.b16 %v119
    %v216 = vunpack.c.l.b16 %v120
    %v217 = vunpack.c.l.b16 %v121
    %v218 = vunpack.c.l.b16 %v122
    %v219 = vunpack.c.l.b16 %v123
    %v220 = vunpack.c.l.b16 %v124
    %v221 = vunpack.c.l.b16 %v125
    %v222 = vunpack.c.l.b16 %v126
    %v223 = vunpack.c.l.b16 %v127
    %v224 = vunpack.c.l.b16 %v128
    %v225 = vunpack.c.l.b16 %v129
    %v226 = vunpack.c.l.b16 %v130
    %v227 = vunpack.c.l.b16 %v131
    %v228 = vunpack.c.l.b16 %v132
    %v229 = vunpack.c.l.b16 %v133
    %v230 = vpack.c.b16 %v215, %v214
    %v231 = vpack.c.b16 %v217, %v216
    %v232 = vpack.c.b16 %v219, %v218
    %v233 = vpack.c.b16 %v221, %v220
    %v234 = vpack.c.b16 %v223, %v222
    %v235 = vpack.c.b16 %v225, %v224
    %v236 = vpack.c.b16 %v227, %v226
    %v237 = vpack.c.b16 %v229, %v228
    %246 = vmatprep.subr.bf16.mxu0 0
    %247 = vmatpush1.bf16.msra.mxu0 %v230
    %248 = vmatprep.subr.bf16.mxu0 0
    %249 = vmatpush1.bf16.msra.mxu0 %v231
    %250 = vmatprep.subr.bf16.mxu0 0
    %251 = vmatpush1.bf16.msra.mxu0 %v232
    %252 = vmatprep.subr.bf16.mxu0 0
    %253 = vmatpush1.bf16.msra.mxu0 %v233
    %254 = vmatprep.subr.bf16.mxu0 0
    %255 = vmatpush1.bf16.msra.mxu0 %v234
    %256 = vmatprep.subr.bf16.mxu0 0
    %257 = vmatpush1.bf16.msra.mxu0 %v235
    %258 = vmatprep.subr.bf16.mxu0 0
    %259 = vmatpush1.bf16.msra.mxu0 %v236
    %260 = vmatprep.subr.bf16.mxu0 0
    %261 = vmatpush1.bf16.msra.mxu0 %v237
    %262 = vmatprep.subr.bf16.mxu0 0
    %263 = vmatpush1.bf16.msra.mxu0 0
    %264 = vmatprep.subr.bf16.mxu0 0
    %265 = vmatpush1.bf16.msra.mxu0 0
    %266 = vmatprep.subr.bf16.mxu0 0
    %267 = vmatpush1.bf16.msra.mxu0 0
    %268 = vmatprep.subr.bf16.mxu0 0
    %269 = vmatpush1.bf16.msra.mxu0 0
    %270 = vmatprep.subr.bf16.mxu0 0
    %271 = vmatpush1.bf16.msra.mxu0 0
    %272 = vmatprep.subr.bf16.mxu0 0
    %273 = vmatpush1.bf16.msra.mxu0 0
    %274 = vmatprep.subr.bf16.mxu0 0
    %275 = vmatpush1.bf16.msra.mxu0 0
    %276 = vmatprep.subr.bf16.mxu0 0
    %277 = vmatpush1.bf16.msra.mxu0 0
    %278 = vmatprep.mubr.bf16.mxu0 0
    %279 = vmatmul.mubr.bf16.gmra.mrb[0].mxu0 %v182
    %v280 = vpop.f32.mrb[0].mxu0
    %v281 = vadd.f32 0.0, %v280
    %v282 = vpop.f32.mrb[0].mxu0
    %v283 = vpop.f32.mrb[0].mxu0
    %v284 = vadd.f32 0.0, %v283
    %v285 = vpop.f32.mrb[0].mxu0
    %286 = vmatprep.mubr.bf16.mxu0 0
    %287 = vmatmul.mubr.bf16.gmra.mrb[0].mxu0 %v183
    %v288 = vpop.f32.mrb[0].mxu0
    %v289 = vadd.f32 0.0, %v288
    %v290 = vpop.f32.mrb[0].mxu0
    %v291 = vpop.f32.mrb[0].mxu0
    %v292 = vadd.f32 0.0, %v291
    %v293 = vpop.f32.mrb[0].mxu0
    %294 = vmatprep.mubr.bf16.mxu0 0
    %295 = vmatmul.mubr.bf16.gmra.mrb[0].mxu0 %v184
    %v296 = vpop.f32.mrb[0].mxu0
    %v297 = vadd.f32 0.0, %v296
    %v298 = vpop.f32.mrb[0].mxu0
    %v299 = vpop.f32.mrb[0].mxu0
    %v300 = vadd.f32 0.0, %v299
    %v301 = vpop.f32.mrb[0].mxu0
    %302 = vmatprep.mubr.bf16.mxu0 0
    %303 = vmatmul.mubr.bf16.gmra.mrb[0].mxu0 %v185
    %v304 = vpop.f32.mrb[0].mxu0
    %v305 = vadd.f32 0.0, %v304
    %v306 = vpop.f32.mrb[0].mxu0
    %v307 = vpop.f32.mrb[0].mxu0
    %v308 = vadd.f32 0.0, %v307
    %v309 = vpop.f32.mrb[0].mxu0
    %310 = vmatprep.mubr.bf16.mxu0 0
    %311 = vmatmul.mubr.bf16.gmra.mrb[0].mxu0 %v186
    %v312 = vpop.f32.mrb[0].mxu0
    %v313 = vadd.f32 0.0, %v312
    %v314 = vpop.f32.mrb[0].mxu0
    %v315 = vpop.f32.mrb[0].mxu0
    %v316 = vadd.f32 0.0, %v315
    %v317 = vpop.f32.mrb[0].mxu0
    %318 = vmatprep.mubr.bf16.mxu0 0
    %319 = vmatmul.mubr.bf16.gmra.mrb[0].mxu0 %v187
    %v320 = vpop.f32.mrb[0].mxu0
    %v321 = vadd.f32 0.0, %v320
    %v322 = vpop.f32.mrb[0].mxu0
    %v323 = vpop.f32.mrb[0].mxu0
    %v324 = vadd.f32 0.0, %v323
    %v325 = vpop.f32.mrb[0].mxu0
    %326 = vmatprep.mubr.bf16.mxu0 0
    %327 = vmatmul.mubr.bf16.gmra.mrb[0].mxu0 %v188
    %v328 = vpop.f32.mrb[0].mxu0
    %v329 = vadd.f32 0.0, %v328
    %v330 = vpop.f32.mrb[0].mxu0
    %v331 = vpop.f32.mrb[0].mxu0
    %v332 = vadd.f32 0.0, %v331
    %v333 = vpop.f32.mrb[0].mxu0
    %334 = vmatprep.mubr.bf16.mxu0 0
    %335 = vmatmul.mubr.bf16.gmra.mrb[0].mxu0 %v189
    %v336 = vpop.f32.mrb[0].mxu0
    %v337 = vadd.f32 0.0, %v336
    %v338 = vpop.f32.mrb[0].mxu0
    %v339 = vpop.f32.mrb[0].mxu0
    %v340 = vadd.f32 0.0, %v339
    %v341 = vpop.f32.mrb[0].mxu0
    %342 = vdwg.mxu0
    %v343 = vpack.c.bf16 %v284, %v281
    %v344 = vpack.c.bf16 %v292, %v289
    %v345 = vpack.c.bf16 %v300, %v297
    %v346 = vpack.c.bf16 %v308, %v305
    %v347 = vpack.c.bf16 %v316, %v313
    %v348 = vpack.c.bf16 %v324, %v321
    %v349 = vpack.c.bf16 %v332, %v329
    %v350 = vpack.c.bf16 %v340, %v337
    %v351 = vld [vmem:[#allocation6] sm:$0xff]
    %v352 = vld [vmem:[#allocation6 + $0x8] sm:$0xff]
    %v353 = vld [vmem:[#allocation6 + $0x10] sm:$0xff]
    %v354 = vld [vmem:[#allocation6 + $0x18] sm:$0xff]
    %v355 = vld [vmem:[#allocation6 + $0x20] sm:$0xff]
    %v356 = vld [vmem:[#allocation6 + $0x28] sm:$0xff]
    %v357 = vld [vmem:[#allocation6 + $0x30] sm:$0xff]
    %v358 = vld [vmem:[#allocation6 + $0x38] sm:$0xff]
    %v359 = vld [vmem:[#allocation6 + $0x40] sm:$0xff]
    %v360 = vld [vmem:[#allocation6 + $0x48] sm:$0xff]
    %v361 = vld [vmem:[#allocation6 + $0x50] sm:$0xff]
    %v362 = vld [vmem:[#allocation6 + $0x58] sm:$0xff]
    %v363 = vld [vmem:[#allocation6 + $0x60] sm:$0xff]
    %v364 = vld [vmem:[#allocation6 + $0x68] sm:$0xff]
    %v365 = vld [vmem:[#allocation6 + $0x70] sm:$0xff]
    %v366 = vld [vmem:[#allocation6 + $0x78] sm:$0xff]
    %v367 = vld [vmem:[%s3] sm:$0x3]
    %v369 = vlaneseq
    %v370 = vshrl.u32 %v369, 7
    %v371 = vsub.s32 0, %v370
    %v372 = vrot.slane %v367, %v371
    %v373 = vlaneseq
    %v374 = vshrl.u32 %v373, 7
    %v375 = vsub.s32 1, %v374
    %v376 = vrot.slane %v367, %v375
    %v395 = vunpack.c.l.b16 %v351
    %v396 = vunpack.c.h.b16 %v351
    %v397 = vunpack.c.l.b16 %v352
    %v398 = vunpack.c.h.b16 %v352
    %v399 = vunpack.c.l.b16 %v353
    %v400 = vunpack.c.h.b16 %v353
    %v401 = vunpack.c.l.b16 %v354
    %v402 = vunpack.c.h.b16 %v354
    %v403 = vunpack.c.l.b16 %v355
    %v404 = vunpack.c.h.b16 %v355
    %v405 = vunpack.c.l.b16 %v356
    %v406 = vunpack.c.h.b16 %v356
    %v407 = vunpack.c.l.b16 %v357
    %v408 = vunpack.c.h.b16 %v357
    %v409 = vunpack.c.l.b16 %v358
    %v410 = vunpack.c.h.b16 %v358
    %v411 = vunpack.c.l.b16 %v359
    %v412 = vunpack.c.h.b16 %v359
    %v413 = vunpack.c.l.b16 %v360
    %v414 = vunpack.c.h.b16 %v360
    %v415 = vunpack.c.l.b16 %v361
    %v416 = vunpack.c.h.b16 %v361
    %v417 = vunpack.c.l.b16 %v362
    %v418 = vunpack.c.h.b16 %v362
    %v419 = vunpack.c.l.b16 %v363
    %v420 = vunpack.c.h.b16 %v363
    %v421 = vunpack.c.l.b16 %v364
    %v422 = vunpack.c.h.b16 %v364
    %v423 = vunpack.c.l.b16 %v365
    %v424 = vunpack.c.h.b16 %v365
    %v425 = vunpack.c.l.b16 %v366
    %v426 = vunpack.c.h.b16 %v366
    %v427 = vpack.c.b16 %v397, %v395
    %v428 = vpack.c.b16 %v398, %v396
    %v429 = vpack.c.b16 %v401, %v399
    %v430 = vpack.c.b16 %v402, %v400
    %v431 = vpack.c.b16 %v405, %v403
    %v432 = vpack.c.b16 %v406, %v404
    %v433 = vpack.c.b16 %v409, %v407
    %v434 = vpack.c.b16 %v410, %v408
    %v435 = vpack.c.b16 %v413, %v411
    %v436 = vpack.c.b16 %v414, %v412
    %v437 = vpack.c.b16 %v417, %v415
    %v438 = vpack.c.b16 %v418, %v416
    %v439 = vpack.c.b16 %v421, %v419
    %v440 = vpack.c.b16 %v422, %v420
    %v441 = vpack.c.b16 %v425, %v423
    %v442 = vpack.c.b16 %v426, %v424
    %459 = vmatprep.subr.bf16.mxu0 %v428
    %460 = vmatpush1.bf16.msra.mxu0 %v427
    %461 = vmatprep.subr.bf16.mxu0 %v430
    %462 = vmatpush1.bf16.msra.mxu0 %v429
    %463 = vmatprep.subr.bf16.mxu0 %v432
    %464 = vmatpush1.bf16.msra.mxu0 %v431
    %465 = vmatprep.subr.bf16.mxu0 %v434
    %466 = vmatpush1.bf16.msra.mxu0 %v433
    %467 = vmatprep.subr.bf16.mxu0 %v436
    %468 = vmatpush1.bf16.msra.mxu0 %v435
    %469 = vmatprep.subr.bf16.mxu0 %v438
    %470 = vmatpush1.bf16.msra.mxu0 %v437
    %471 = vmatprep.subr.bf16.mxu0 %v440
    %472 = vmatpush1.bf16.msra.mxu0 %v439
    %473 = vmatprep.subr.bf16.mxu0 %v442
    %474 = vmatpush1.bf16.msra.mxu0 %v441
    %475 = vmatprep.subr.bf16.mxu0 0
    %476 = vmatpush1.bf16.msra.mxu0 0
    %477 = vmatprep.subr.bf16.mxu0 0
    %478 = vmatpush1.bf16.msra.mxu0 0
    %479 = vmatprep.subr.bf16.mxu0 0
    %480 = vmatpush1.bf16.msra.mxu0 0
    %481 = vmatprep.subr.bf16.mxu0 0
    %482 = vmatpush1.bf16.msra.mxu0 0
    %483 = vmatprep.subr.bf16.mxu0 0
    %484 = vmatpush1.bf16.msra.mxu0 0
    %485 = vmatprep.subr.bf16.mxu0 0
    %486 = vmatpush1.bf16.msra.mxu0 0
    %487 = vmatprep.subr.bf16.mxu0 0
    %488 = vmatpush1.bf16.msra.mxu0 0
    %489 = vmatprep.subr.bf16.mxu0 0
    %490 = vmatpush1.bf16.msra.mxu0 0
    %491 = vmatprep.mubr.bf16.mxu0 0
    %492 = vmatmul.mubr.bf16.gmra.mrb[0].mxu0 %v343
    %v493 = vpop.f32.mrb[0].mxu0
    %v494 = vadd.f32 %v372, %v493
    %v495 = vpop.f32.mrb[0].mxu0
    %v496 = vadd.f32 %v376, %v495
    %v497 = vpop.f32.mrb[0].mxu0
    %v498 = vadd.f32 %v372, %v497
    %v499 = vpop.f32.mrb[0].mxu0
    %v500 = vadd.f32 %v376, %v499
    %501 = vmatprep.mubr.bf16.mxu0 0
    %502 = vmatmul.mubr.bf16.gmra.mrb[0].mxu0 %v344
    %v503 = vpop.f32.mrb[0].mxu0
    %v504 = vadd.f32 %v372, %v503
    %v505 = vpop.f32.mrb[0].mxu0
    %v506 = vadd.f32 %v376, %v505
    %v507 = vpop.f32.mrb[0].mxu0
    %v508 = vadd.f32 %v372, %v507
    %v509 = vpop.f32.mrb[0].mxu0
    %v510 = vadd.f32 %v376, %v509
    %511 = vmatprep.mubr.bf16.mxu0 0
    %512 = vmatmul.mubr.bf16.gmra.mrb[0].mxu0 %v345
    %v513 = vpop.f32.mrb[0].mxu0
    %v514 = vadd.f32 %v372, %v513
    %v515 = vpop.f32.mrb[0].mxu0
    %v516 = vadd.f32 %v376, %v515
    %v517 = vpop.f32.mrb[0].mxu0
    %v518 = vadd.f32 %v372, %v517
    %v519 = vpop.f32.mrb[0].mxu0
    %v520 = vadd.f32 %v376, %v519
    %521 = vmatprep.mubr.bf16.mxu0 0
    %522 = vmatmul.mubr.bf16.gmra.mrb[0].mxu0 %v346
    %v523 = vpop.f32.mrb[0].mxu0
    %v524 = vadd.f32 %v372, %v523
    %v525 = vpop.f32.mrb[0].mxu0
    %v526 = vadd.f32 %v376, %v525
    %v527 = vpop.f32.mrb[0].mxu0
    %v528 = vadd.f32 %v372, %v527
    %v529 = vpop.f32.mrb[0].mxu0
    %v530 = vadd.f32 %v376, %v529
    %531 = vmatprep.mubr.bf16.mxu0 0
    %532 = vmatmul.mubr.bf16.gmra.mrb[0].mxu0 %v347
    %v533 = vpop.f32.mrb[0].mxu0
    %v534 = vadd.f32 %v372, %v533
    %v535 = vpop.f32.mrb[0].mxu0
    %v536 = vadd.f32 %v376, %v535
    %v537 = vpop.f32.mrb[0].mxu0
    %v538 = vadd.f32 %v372, %v537
    %v539 = vpop.f32.mrb[0].mxu0
    %v540 = vadd.f32 %v376, %v539
    %541 = vmatprep.mubr.bf16.mxu0 0
    %542 = vmatmul.mubr.bf16.gmra.mrb[0].mxu0 %v348
    %v543 = vpop.f32.mrb[0].mxu0
    %v544 = vadd.f32 %v372, %v543
    %v545 = vpop.f32.mrb[0].mxu0
    %v546 = vadd.f32 %v376, %v545
    %v547 = vpop.f32.mrb[0].mxu0
    %v548 = vadd.f32 %v372, %v547
    %v549 = vpop.f32.mrb[0].mxu0
    %v550 = vadd.f32 %v376, %v549
    %551 = vmatprep.mubr.bf16.mxu0 0
    %552 = vmatmul.mubr.bf16.gmra.mrb[0].mxu0 %v349
    %v553 = vpop.f32.mrb[0].mxu0
    %v554 = vadd.f32 %v372, %v553
    %v555 = vpop.f32.mrb[0].mxu0
    %v556 = vadd.f32 %v376, %v555
    %v557 = vpop.f32.mrb[0].mxu0
    %v558 = vadd.f32 %v372, %v557
    %v559 = vpop.f32.mrb[0].mxu0
    %v560 = vadd.f32 %v376, %v559
    %561 = vmatprep.mubr.bf16.mxu0 0
    %562 = vmatmul.mubr.bf16.gmra.mrb[0].mxu0 %v350
    %v563 = vpop.f32.mrb[0].mxu0
    %v564 = vadd.f32 %v372, %v563
    %v565 = vpop.f32.mrb[0].mxu0
    %v566 = vadd.f32 %v376, %v565
    %v567 = vpop.f32.mrb[0].mxu0
    %v568 = vadd.f32 %v372, %v567
    %v569 = vpop.f32.mrb[0].mxu0
    %v570 = vadd.f32 %v376, %v569
    %571 = vdwg.mxu0
    %v572 = vmax.f32 %v494, 0.0
    %v573 = vmax.f32 %v496, 0.0
    %v574 = vmax.f32 %v498, 0.0
    %v575 = vmax.f32 %v500, 0.0
    %v576 = vmax.f32 %v504, 0.0
    %v577 = vmax.f32 %v506, 0.0
    %v578 = vmax.f32 %v508, 0.0
    %v579 = vmax.f32 %v510, 0.0
    %v580 = vmax.f32 %v514, 0.0
    %v581 = vmax.f32 %v516, 0.0
    %v582 = vmax.f32 %v518, 0.0
    %v583 = vmax.f32 %v520, 0.0
    %v584 = vmax.f32 %v524, 0.0
    %v585 = vmax.f32 %v526, 0.0
    %v586 = vmax.f32 %v528, 0.0
    %v587 = vmax.f32 %v530, 0.0
    %v588 = vmax.f32 %v534, 0.0
    %v589 = vmax.f32 %v536, 0.0
    %v590 = vmax.f32 %v538, 0.0
    %v591 = vmax.f32 %v540, 0.0
    %v592 = vmax.f32 %v544, 0.0
    %v593 = vmax.f32 %v546, 0.0
    %v594 = vmax.f32 %v548, 0.0
    %v595 = vmax.f32 %v550, 0.0
    %v596 = vmax.f32 %v554, 0.0
    %v597 = vmax.f32 %v556, 0.0
    %v598 = vmax.f32 %v558, 0.0
    %v599 = vmax.f32 %v560, 0.0
    %v600 = vmax.f32 %v564, 0.0
    %v601 = vmax.f32 %v566, 0.0
    %v602 = vmax.f32 %v568, 0.0
    %v603 = vmax.f32 %v570, 0.0
    %v604 = vpack.c.bf16 %v574, %v572
    %v605 = vpack.c.bf16 %v575, %v573
    %v606 = vpack.c.bf16 %v578, %v576
    %v607 = vpack.c.bf16 %v579, %v577
    %v608 = vpack.c.bf16 %v582, %v580
    %v609 = vpack.c.bf16 %v583, %v581
    %v610 = vpack.c.bf16 %v586, %v584
    %v611 = vpack.c.bf16 %v587, %v585
    %v612 = vpack.c.bf16 %v590, %v588
    %v613 = vpack.c.bf16 %v591, %v589
    %v614 = vpack.c.bf16 %v594, %v592
    %v615 = vpack.c.bf16 %v595, %v593
    %v616 = vpack.c.bf16 %v598, %v596
    %v617 = vpack.c.bf16 %v599, %v597
    %v618 = vpack.c.bf16 %v602, %v600
    %v619 = vpack.c.bf16 %v603, %v601
    %v620 = vld [vmem:[#allocation7] sm:$0xf]
    %v621 = vld [vmem:[#allocation7 + $0x4] sm:$0xf]
    %v622 = vld [vmem:[#allocation7 + $0x8] sm:$0xf]
    %v623 = vld [vmem:[#allocation7 + $0xc] sm:$0xf]
    %v624 = vld [vmem:[#allocation7 + $0x10] sm:$0xf]
    %v625 = vld [vmem:[#allocation7 + $0x14] sm:$0xf]
    %v626 = vld [vmem:[#allocation7 + $0x18] sm:$0xf]
    %v627 = vld [vmem:[#allocation7 + $0x1c] sm:$0xf]
    %v628 = vld [vmem:[#allocation7 + $0x20] sm:$0xf]
    %v629 = vld [vmem:[#allocation7 + $0x24] sm:$0xf]
    %v630 = vld [vmem:[#allocation7 + $0x28] sm:$0xf]
    %v631 = vld [vmem:[#allocation7 + $0x2c] sm:$0xf]
    %v632 = vld [vmem:[#allocation7 + $0x30] sm:$0xf]
    %v633 = vld [vmem:[#allocation7 + $0x34] sm:$0xf]
    %v634 = vld [vmem:[#allocation7 + $0x38] sm:$0xf]
    %v635 = vld [vmem:[#allocation7 + $0x3c] sm:$0xf]
    %v636 = vld [vmem:[#allocation7 + $0x40] sm:$0xf]
    %v637 = vld [vmem:[#allocation7 + $0x44] sm:$0xf]
    %v638 = vld [vmem:[#allocation7 + $0x48] sm:$0xf]
    %v639 = vld [vmem:[#allocation7 + $0x4c] sm:$0xf]
    %v640 = vld [vmem:[#allocation7 + $0x50] sm:$0xf]
    %v641 = vld [vmem:[#allocation7 + $0x54] sm:$0xf]
    %v642 = vld [vmem:[#allocation7 + $0x58] sm:$0xf]
    %v643 = vld [vmem:[#allocation7 + $0x5c] sm:$0xf]
    %v644 = vld [vmem:[#allocation7 + $0x60] sm:$0xf]
    %v645 = vld [vmem:[#allocation7 + $0x64] sm:$0xf]
    %v646 = vld [vmem:[#allocation7 + $0x68] sm:$0xf]
    %v647 = vld [vmem:[#allocation7 + $0x6c] sm:$0xf]
    %v648 = vld [vmem:[#allocation7 + $0x70] sm:$0xf]
    %v649 = vld [vmem:[#allocation7 + $0x74] sm:$0xf]
    %v650 = vld [vmem:[#allocation7 + $0x78] sm:$0xf]
    %v651 = vld [vmem:[#allocation7 + $0x7c] sm:$0xf]
    %v684 = vunpack.c.l.b16 %v620
    %v685 = vunpack.c.l.b16 %v621
    %v686 = vunpack.c.l.b16 %v622
    %v687 = vunpack.c.l.b16 %v623
    %v688 = vunpack.c.l.b16 %v624
    %v689 = vunpack.c.l.b16 %v625
    %v690 = vunpack.c.l.b16 %v626
    %v691 = vunpack.c.l.b16 %v627
    %v692 = vunpack.c.l.b16 %v628
    %v693 = vunpack.c.l.b16 %v629
    %v694 = vunpack.c.l.b16 %v630
    %v695 = vunpack.c.l.b16 %v631
    %v696 = vunpack.c.l.b16 %v632
    %v697 = vunpack.c.l.b16 %v633
    %v698 = vunpack.c.l.b16 %v634
    %v699 = vunpack.c.l.b16 %v635
    %v700 = vunpack.c.l.b16 %v636
    %v701 = vunpack.c.l.b16 %v637
    %v702 = vunpack.c.l.b16 %v638
    %v703 = vunpack.c.l.b16 %v639
    %v704 = vunpack.c.l.b16 %v640
    %v705 = vunpack.c.l.b16 %v641
    %v706 = vunpack.c.l.b16 %v642
    %v707 = vunpack.c.l.b16 %v643
    %v708 = vunpack.c.l.b16 %v644
    %v709 = vunpack.c.l.b16 %v645
    %v710 = vunpack.c.l.b16 %v646
    %v711 = vunpack.c.l.b16 %v647
    %v712 = vunpack.c.l.b16 %v648
    %v713 = vunpack.c.l.b16 %v649
    %v714 = vunpack.c.l.b16 %v650
    %v715 = vunpack.c.l.b16 %v651
    %v716 = vpack.c.b16 %v685, %v684
    %v717 = vpack.c.b16 %v687, %v686
    %v718 = vpack.c.b16 %v689, %v688
    %v719 = vpack.c.b16 %v691, %v690
    %v720 = vpack.c.b16 %v693, %v692
    %v721 = vpack.c.b16 %v695, %v694
    %v722 = vpack.c.b16 %v697, %v696
    %v723 = vpack.c.b16 %v699, %v698
    %v724 = vpack.c.b16 %v701, %v700
    %v725 = vpack.c.b16 %v703, %v702
    %v726 = vpack.c.b16 %v705, %v704
    %v727 = vpack.c.b16 %v707, %v706
    %v728 = vpack.c.b16 %v709, %v708
    %v729 = vpack.c.b16 %v711, %v710
    %v730 = vpack.c.b16 %v713, %v712
    %v731 = vpack.c.b16 %v715, %v714
    %748 = vmatprep.subr.bf16.mxu0 0
    %749 = vmatpush1.bf16.msra.mxu0 %v716
    %750 = vmatprep.subr.bf16.mxu0 0
    %751 = vmatpush1.bf16.msra.mxu0 %v717
    %752 = vmatprep.subr.bf16.mxu0 0
    %753 = vmatpush1.bf16.msra.mxu0 %v718
    %754 = vmatprep.subr.bf16.mxu0 0
    %755 = vmatpush1.bf16.msra.mxu0 %v719
    %756 = vmatprep.subr.bf16.mxu0 0
    %757 = vmatpush1.bf16.msra.mxu0 %v720
    %758 = vmatprep.subr.bf16.mxu0 0
    %759 = vmatpush1.bf16.msra.mxu0 %v721
    %760 = vmatprep.subr.bf16.mxu0 0
    %761 = vmatpush1.bf16.msra.mxu0 %v722
    %762 = vmatprep.subr.bf16.mxu0 0
    %763 = vmatpush1.bf16.msra.mxu0 %v723
    %764 = vmatprep.subr.bf16.mxu0 0
    %765 = vmatpush1.bf16.msra.mxu0 %v724
    %766 = vmatprep.subr.bf16.mxu0 0
    %767 = vmatpush1.bf16.msra.mxu0 %v725
    %768 = vmatprep.subr.bf16.mxu0 0
    %769 = vmatpush1.bf16.msra.mxu0 %v726
    %770 = vmatprep.subr.bf16.mxu0 0
    %771 = vmatpush1.bf16.msra.mxu0 %v727
    %772 = vmatprep.subr.bf16.mxu0 0
    %773 = vmatpush1.bf16.msra.mxu0 %v728
    %774 = vmatprep.subr.bf16.mxu0 0
    %775 = vmatpush1.bf16.msra.mxu0 %v729
    %776 = vmatprep.subr.bf16.mxu0 0
    %777 = vmatpush1.bf16.msra.mxu0 %v730
    %778 = vmatprep.subr.bf16.mxu0 0
    %779 = vmatpush1.bf16.msra.mxu0 %v731
    %780 = vmatprep.mubr.bf16.mxu0 %v605
    %781 = vmatmul.mubr.bf16.gmra.mrb[0].mxu0 %v604
    %v782 = vpop.f32.mrb[0].mxu0
    %v783 = vadd.f32 0.0, %v782
    %v784 = vpop.f32.mrb[0].mxu0
    %v785 = vpop.f32.mrb[0].mxu0
    %v786 = vadd.f32 0.0, %v785
    %v787 = vpop.f32.mrb[0].mxu0
    %788 = vmatprep.mubr.bf16.mxu0 %v607
    %789 = vmatmul.mubr.bf16.gmra.mrb[0].mxu0 %v606
    %v790 = vpop.f32.mrb[0].mxu0
    %v791 = vadd.f32 0.0, %v790
    %v792 = vpop.f32.mrb[0].mxu0
    %v793 = vpop.f32.mrb[0].mxu0
    %v794 = vadd.f32 0.0, %v793
    %v795 = vpop.f32.mrb[0].mxu0
    %796 = vmatprep.mubr.bf16.mxu0 %v609
    %797 = vmatmul.mubr.bf16.gmra.mrb[0].mxu0 %v608
    %v798 = vpop.f32.mrb[0].mxu0
    %v799 = vadd.f32 0.0, %v798
    %v800 = vpop.f32.mrb[0].mxu0
    %v801 = vpop.f32.mrb[0].mxu0
    %v802 = vadd.f32 0.0, %v801
    %v803 = vpop.f32.mrb[0].mxu0
    %804 = vmatprep.mubr.bf16.mxu0 %v611
    %805 = vmatmul.mubr.bf16.gmra.mrb[0].mxu0 %v610
    %v806 = vpop.f32.mrb[0].mxu0
    %v807 = vadd.f32 0.0, %v806
    %v808 = vpop.f32.mrb[0].mxu0
    %v809 = vpop.f32.mrb[0].mxu0
    %v810 = vadd.f32 0.0, %v809
    %v811 = vpop.f32.mrb[0].mxu0
    %812 = vmatprep.mubr.bf16.mxu0 %v613
    %813 = vmatmul.mubr.bf16.gmra.mrb[0].mxu0 %v612
    %v814 = vpop.f32.mrb[0].mxu0
    %v815 = vadd.f32 0.0, %v814
    %v816 = vpop.f32.mrb[0].mxu0
    %v817 = vpop.f32.mrb[0].mxu0
    %v818 = vadd.f32 0.0, %v817
    %v819 = vpop.f32.mrb[0].mxu0
    %820 = vmatprep.mubr.bf16.mxu0 %v615
    %821 = vmatmul.mubr.bf16.gmra.mrb[0].mxu0 %v614
    %v822 = vpop.f32.mrb[0].mxu0
    %v823 = vadd.f32 0.0, %v822
    %v824 = vpop.f32.mrb[0].mxu0
    %v825 = vpop.f32.mrb[0].mxu0
    %v826 = vadd.f32 0.0, %v825
    %v827 = vpop.f32.mrb[0].mxu0
    %828 = vmatprep.mubr.bf16.mxu0 %v617
    %829 = vmatmul.mubr.bf16.gmra.mrb[0].mxu0 %v616
    %v830 = vpop.f32.mrb[0].mxu0
    %v831 = vadd.f32 0.0, %v830
    %v832 = vpop.f32.mrb[0].mxu0
    %v833 = vpop.f32.mrb[0].mxu0
    %v834 = vadd.f32 0.0, %v833
    %v835 = vpop.f32.mrb[0].mxu0
    %836 = vmatprep.mubr.bf16.mxu0 %v619
    %837 = vmatmul.mubr.bf16.gmra.mrb[0].mxu0 %v618
    %v838 = vpop.f32.mrb[0].mxu0
    %v839 = vadd.f32 0.0, %v838
    %v840 = vpop.f32.mrb[0].mxu0
    %v841 = vpop.f32.mrb[0].mxu0
    %v842 = vadd.f32 0.0, %v841
    %v843 = vpop.f32.mrb[0].mxu0
    %844 = vdwg.mxu0
    %v845 = vpack.c.bf16 %v786, %v783
    %v846 = vpack.c.bf16 %v794, %v791
    %v847 = vpack.c.bf16 %v802, %v799
    %v848 = vpack.c.bf16 %v810, %v807
    %v849 = vpack.c.bf16 %v818, %v815
    %v850 = vpack.c.bf16 %v826, %v823
    %v851 = vpack.c.bf16 %v834, %v831
    %v852 = vpack.c.bf16 %v842, %v839
    %v853 = vld [vmem:[%s5] sm:$0x1]
    %v855 = vlaneseq
    %v856 = vshrl.u32 %v855, 7
    %v857 = vsub.s32 0, %v856
    %v858 = vrot.slane %v853, %v857
    %860 = vmatprep.subr.bf16.mxu0 0
    %861 = vmatpush1.bf16.msra.mxu0 %v845
    %862 = vmatprep.subr.bf16.mxu0 0
    %863 = vmatpush1.bf16.msra.mxu0 %v846
    %864 = vmatprep.subr.bf16.mxu0 0
    %865 = vmatpush1.bf16.msra.mxu0 %v847
    %866 = vmatprep.subr.bf16.mxu0 0
    %867 = vmatpush1.bf16.msra.mxu0 %v848
    %868 = vmatprep.subr.bf16.mxu0 0
    %869 = vmatpush1.bf16.msra.mxu0 %v849
    %870 = vmatprep.subr.bf16.mxu0 0
    %871 = vmatpush1.bf16.msra.mxu0 %v850
    %872 = vmatprep.subr.bf16.mxu0 0
    %873 = vmatpush1.bf16.msra.mxu0 %v851
    %874 = vmatprep.subr.bf16.mxu0 0
    %875 = vmatpush1.bf16.msra.mxu0 %v852
    %876 = vmatprep.subr.bf16.mxu0 0
    %877 = vmatpush1.bf16.msra.mxu0 0
    %878 = vmatprep.subr.bf16.mxu0 0
    %879 = vmatpush1.bf16.msra.mxu0 0
    %880 = vmatprep.subr.bf16.mxu0 0
    %881 = vmatpush1.bf16.msra.mxu0 0
    %882 = vmatprep.subr.bf16.mxu0 0
    %883 = vmatpush1.bf16.msra.mxu0 0
    %884 = vmatprep.subr.bf16.mxu0 0
    %885 = vmatpush1.bf16.msra.mxu0 0
    %886 = vmatprep.subr.bf16.mxu0 0
    %887 = vmatpush1.bf16.msra.mxu0 0
    %888 = vmatprep.subr.bf16.mxu0 0
    %889 = vmatpush1.bf16.msra.mxu0 0
    %890 = vmatprep.subr.bf16.mxu0 0
    %891 = vmatpush1.bf16.msra.mxu0 0
    %892 = vmatprep.mubr.bf16.mxu0 0
    %893 = vmatmul.mubr.bf16.gmra.mrb[0].mxu0 %v182
    %v894 = vpop.f32.mrb[0].mxu0
    %v895 = vadd.f32 %v858, %v894
    %v896 = vpop.f32.mrb[0].mxu0
    %v897 = vpop.f32.mrb[0].mxu0
    %v898 = vadd.f32 %v858, %v897
    %v899 = vpop.f32.mrb[0].mxu0
    %900 = vmatprep.mubr.bf16.mxu0 0
    %901 = vmatmul.mubr.bf16.gmra.mrb[0].mxu0 %v183
    %v902 = vpop.f32.mrb[0].mxu0
    %v903 = vadd.f32 %v858, %v902
    %v904 = vpop.f32.mrb[0].mxu0
    %v905 = vpop.f32.mrb[0].mxu0
    %v906 = vadd.f32 %v858, %v905
    %v907 = vpop.f32.mrb[0].mxu0
    %908 = vmatprep.mubr.bf16.mxu0 0
    %909 = vmatmul.mubr.bf16.gmra.mrb[0].mxu0 %v184
    %v910 = vpop.f32.mrb[0].mxu0
    %v911 = vadd.f32 %v858, %v910
    %v912 = vpop.f32.mrb[0].mxu0
    %v913 = vpop.f32.mrb[0].mxu0
    %v914 = vadd.f32 %v858, %v913
    %v915 = vpop.f32.mrb[0].mxu0
    %916 = vmatprep.mubr.bf16.mxu0 0
    %917 = vmatmul.mubr.bf16.gmra.mrb[0].mxu0 %v185
    %v918 = vpop.f32.mrb[0].mxu0
    %v919 = vadd.f32 %v858, %v918
    %v920 = vpop.f32.mrb[0].mxu0
    %v921 = vpop.f32.mrb[0].mxu0
    %v922 = vadd.f32 %v858, %v921
    %v923 = vpop.f32.mrb[0].mxu0
    %924 = vmatprep.mubr.bf16.mxu0 0
    %925 = vmatmul.mubr.bf16.gmra.mrb[0].mxu0 %v186
    %v926 = vpop.f32.mrb[0].mxu0
    %v927 = vadd.f32 %v858, %v926
    %v928 = vpop.f32.mrb[0].mxu0
    %v929 = vpop.f32.mrb[0].mxu0
    %v930 = vadd.f32 %v858, %v929
    %v931 = vpop.f32.mrb[0].mxu0
    %932 = vmatprep.mubr.bf16.mxu0 0
    %933 = vmatmul.mubr.bf16.gmra.mrb[0].mxu0 %v187
    %v934 = vpop.f32.mrb[0].mxu0
    %v935 = vadd.f32 %v858, %v934
    %v936 = vpop.f32.mrb[0].mxu0
    %v937 = vpop.f32.mrb[0].mxu0
    %v938 = vadd.f32 %v858, %v937
    %v939 = vpop.f32.mrb[0].mxu0
    %940 = vmatprep.mubr.bf16.mxu0 0
    %941 = vmatmul.mubr.bf16.gmra.mrb[0].mxu0 %v188
    %v942 = vpop.f32.mrb[0].mxu0
    %v943 = vadd.f32 %v858, %v942
    %v944 = vpop.f32.mrb[0].mxu0
    %v945 = vpop.f32.mrb[0].mxu0
    %v946 = vadd.f32 %v858, %v945
    %v947 = vpop.f32.mrb[0].mxu0
    %948 = vmatprep.mubr.bf16.mxu0 0
    %949 = vmatmul.mubr.bf16.gmra.mrb[0].mxu0 %v189
    %v950 = vpop.f32.mrb[0].mxu0
    %v951 = vadd.f32 %v858, %v950
    %v952 = vpop.f32.mrb[0].mxu0
    %v953 = vpop.f32.mrb[0].mxu0
    %v954 = vadd.f32 %v858, %v953
    %v955 = vpop.f32.mrb[0].mxu0
    %956 = vdwg.mxu0
    %v957 = vmax.f32 %v895, 0.0
    %v958 = vmax.f32 %v898, 0.0
    %v959 = vmax.f32 %v903, 0.0
    %v960 = vmax.f32 %v906, 0.0
    %v961 = vmax.f32 %v911, 0.0
    %v962 = vmax.f32 %v914, 0.0
    %v963 = vmax.f32 %v919, 0.0
    %v964 = vmax.f32 %v922, 0.0
    %v965 = vmax.f32 %v927, 0.0
    %v966 = vmax.f32 %v930, 0.0
    %v967 = vmax.f32 %v935, 0.0
    %v968 = vmax.f32 %v938, 0.0
    %v969 = vmax.f32 %v943, 0.0
    %v970 = vmax.f32 %v946, 0.0
    %v971 = vmax.f32 %v951, 0.0
    %v972 = vmax.f32 %v954, 0.0
    %v973 = vpack.c.bf16 %v958, %v957
    %v974 = vpack.c.bf16 %v960, %v959
    %v975 = vpack.c.bf16 %v962, %v961
    %v976 = vpack.c.bf16 %v964, %v963
    %v977 = vpack.c.bf16 %v966, %v965
    %v978 = vpack.c.bf16 %v968, %v967
    %v979 = vpack.c.bf16 %v970, %v969
    %v980 = vpack.c.bf16 %v972, %v971
    %v981 = vld [vmem:[#allocation9] sm:$0xf]
    %v982 = vld [vmem:[#allocation9 + $0x4] sm:$0xf]
    %v983 = vld [vmem:[#allocation9 + $0x8] sm:$0xf]
    %v984 = vld [vmem:[#allocation9 + $0xc] sm:$0xf]
    %v985 = vld [vmem:[#allocation9 + $0x10] sm:$0xf]
    %v986 = vld [vmem:[#allocation9 + $0x14] sm:$0xf]
    %v987 = vld [vmem:[#allocation9 + $0x18] sm:$0xf]
    %v988 = vld [vmem:[#allocation9 + $0x1c] sm:$0xf]
    %v989 = vld [vmem:[#allocation9 + $0x20] sm:$0xf]
    %v990 = vld [vmem:[#allocation9 + $0x24] sm:$0xf]
    %v991 = vld [vmem:[#allocation9 + $0x28] sm:$0xf]
    %v992 = vld [vmem:[#allocation9 + $0x2c] sm:$0xf]
    %v993 = vld [vmem:[#allocation9 + $0x30] sm:$0xf]
    %v994 = vld [vmem:[#allocation9 + $0x34] sm:$0xf]
    %v995 = vld [vmem:[#allocation9 + $0x38] sm:$0xf]
    %v996 = vld [vmem:[#allocation9 + $0x3c] sm:$0xf]
    %v1013 = vunpack.c.l.b16 %v981
    %v1014 = vunpack.c.l.b16 %v982
    %v1015 = vunpack.c.l.b16 %v983
    %v1016 = vunpack.c.l.b16 %v984
    %v1017 = vunpack.c.l.b16 %v985
    %v1018 = vunpack.c.l.b16 %v986
    %v1019 = vunpack.c.l.b16 %v987
    %v1020 = vunpack.c.l.b16 %v988
    %v1021 = vunpack.c.l.b16 %v989
    %v1022 = vunpack.c.l.b16 %v990
    %v1023 = vunpack.c.l.b16 %v991
    %v1024 = vunpack.c.l.b16 %v992
    %v1025 = vunpack.c.l.b16 %v993
    %v1026 = vunpack.c.l.b16 %v994
    %v1027 = vunpack.c.l.b16 %v995
    %v1028 = vunpack.c.l.b16 %v996
    %v1029 = vpack.c.b16 %v1014, %v1013
    %v1030 = vpack.c.b16 %v1016, %v1015
    %v1031 = vpack.c.b16 %v1018, %v1017
    %v1032 = vpack.c.b16 %v1020, %v1019
    %v1033 = vpack.c.b16 %v1022, %v1021
    %v1034 = vpack.c.b16 %v1024, %v1023
    %v1035 = vpack.c.b16 %v1026, %v1025
    %v1036 = vpack.c.b16 %v1028, %v1027
    %1045 = vmatprep.subr.bf16.mxu0 0
    %1046 = vmatpush1.bf16.msra.mxu0 %v1029
    %1047 = vmatprep.subr.bf16.mxu0 0
    %1048 = vmatpush1.bf16.msra.mxu0 %v1030
    %1049 = vmatprep.subr.bf16.mxu0 0
    %1050 = vmatpush1.bf16.msra.mxu0 %v1031
    %1051 = vmatprep.subr.bf16.mxu0 0
    %1052 = vmatpush1.bf16.msra.mxu0 %v1032
    %1053 = vmatprep.subr.bf16.mxu0 0
    %1054 = vmatpush1.bf16.msra.mxu0 %v1033
    %1055 = vmatprep.subr.bf16.mxu0 0
    %1056 = vmatpush1.bf16.msra.mxu0 %v1034
    %1057 = vmatprep.subr.bf16.mxu0 0
    %1058 = vmatpush1.bf16.msra.mxu0 %v1035
    %1059 = vmatprep.subr.bf16.mxu0 0
    %1060 = vmatpush1.bf16.msra.mxu0 %v1036
    %1061 = vmatprep.subr.bf16.mxu0 0
    %1062 = vmatpush1.bf16.msra.mxu0 0
    %1063 = vmatprep.subr.bf16.mxu0 0
    %1064 = vmatpush1.bf16.msra.mxu0 0
    %1065 = vmatprep.subr.bf16.mxu0 0
    %1066 = vmatpush1.bf16.msra.mxu0 0
    %1067 = vmatprep.subr.bf16.mxu0 0
    %1068 = vmatpush1.bf16.msra.mxu0 0
    %1069 = vmatprep.subr.bf16.mxu0 0
    %1070 = vmatpush1.bf16.msra.mxu0 0
    %1071 = vmatprep.subr.bf16.mxu0 0
    %1072 = vmatpush1.bf16.msra.mxu0 0
    %1073 = vmatprep.subr.bf16.mxu0 0
    %1074 = vmatpush1.bf16.msra.mxu0 0
    %1075 = vmatprep.subr.bf16.mxu0 0
    %1076 = vmatpush1.bf16.msra.mxu0 0
    %1077 = vmatprep.mubr.bf16.mxu0 0
    %1078 = vmatmul.mubr.bf16.gmra.mrb[0].mxu0 %v973
    %v1079 = vpop.f32.mrb[0].mxu0
    %v1080 = vadd.f32 0.0, %v1079
    %v1081 = vpop.f32.mrb[0].mxu0
    %v1082 = vpop.f32.mrb[0].mxu0
    %v1083 = vadd.f32 0.0, %v1082
    %v1084 = vpop.f32.mrb[0].mxu0
    %1085 = vmatprep.mubr.bf16.mxu0 0
    %1086 = vmatmul.mubr.bf16.gmra.mrb[0].mxu0 %v974
    %v1087 = vpop.f32.mrb[0].mxu0
    %v1088 = vadd.f32 0.0, %v1087
    %v1089 = vpop.f32.mrb[0].mxu0
    %v1090 = vpop.f32.mrb[0].mxu0
    %v1091 = vadd.f32 0.0, %v1090
    %v1092 = vpop.f32.mrb[0].mxu0
    %1093 = vmatprep.mubr.bf16.mxu0 0
    %1094 = vmatmul.mubr.bf16.gmra.mrb[0].mxu0 %v975
    %v1095 = vpop.f32.mrb[0].mxu0
    %v1096 = vadd.f32 0.0, %v1095
    %v1097 = vpop.f32.mrb[0].mxu0
    %v1098 = vpop.f32.mrb[0].mxu0
    %v1099 = vadd.f32 0.0, %v1098
    %v1100 = vpop.f32.mrb[0].mxu0
    %1101 = vmatprep.mubr.bf16.mxu0 0
    %1102 = vmatmul.mubr.bf16.gmra.mrb[0].mxu0 %v976
    %v1103 = vpop.f32.mrb[0].mxu0
    %v1104 = vadd.f32 0.0, %v1103
    %v1105 = vpop.f32.mrb[0].mxu0
    %v1106 = vpop.f32.mrb[0].mxu0
    %v1107 = vadd.f32 0.0, %v1106
    %v1108 = vpop.f32.mrb[0].mxu0
    %1109 = vmatprep.mubr.bf16.mxu0 0
    %1110 = vmatmul.mubr.bf16.gmra.mrb[0].mxu0 %v977
    %v1111 = vpop.f32.mrb[0].mxu0
    %v1112 = vadd.f32 0.0, %v1111
    %v1113 = vpop.f32.mrb[0].mxu0
    %v1114 = vpop.f32.mrb[0].mxu0
    %v1115 = vadd.f32 0.0, %v1114
    %v1116 = vpop.f32.mrb[0].mxu0
    %1117 = vmatprep.mubr.bf16.mxu0 0
    %1118 = vmatmul.mubr.bf16.gmra.mrb[0].mxu0 %v978
    %v1119 = vpop.f32.mrb[0].mxu0
    %v1120 = vadd.f32 0.0, %v1119
    %v1121 = vpop.f32.mrb[0].mxu0
    %v1122 = vpop.f32.mrb[0].mxu0
    %v1123 = vadd.f32 0.0, %v1122
    %v1124 = vpop.f32.mrb[0].mxu0
    %1125 = vmatprep.mubr.bf16.mxu0 0
    %1126 = vmatmul.mubr.bf16.gmra.mrb[0].mxu0 %v979
    %v1127 = vpop.f32.mrb[0].mxu0
    %v1128 = vadd.f32 0.0, %v1127
    %v1129 = vpop.f32.mrb[0].mxu0
    %v1130 = vpop.f32.mrb[0].mxu0
    %v1131 = vadd.f32 0.0, %v1130
    %v1132 = vpop.f32.mrb[0].mxu0
    %1133 = vmatprep.mubr.bf16.mxu0 0
    %1134 = vmatmul.mubr.bf16.gmra.mrb[0].mxu0 %v980
    %v1135 = vpop.f32.mrb[0].mxu0
    %v1136 = vadd.f32 0.0, %v1135
    %v1137 = vpop.f32.mrb[0].mxu0
    %v1138 = vpop.f32.mrb[0].mxu0
    %v1139 = vadd.f32 0.0, %v1138
    %v1140 = vpop.f32.mrb[0].mxu0
    %1141 = vdwg.mxu0
    %v1142 = vpack.c.bf16 %v1083, %v1080
    %v1143 = vpack.c.bf16 %v1091, %v1088
    %v1144 = vpack.c.bf16 %v1099, %v1096
    %v1145 = vpack.c.bf16 %v1107, %v1104
    %v1146 = vpack.c.bf16 %v1115, %v1112
    %v1147 = vpack.c.bf16 %v1123, %v1120
    %v1148 = vpack.c.bf16 %v1131, %v1128
    %v1149 = vpack.c.bf16 %v1139, %v1136
    %v1150 = vld [vmem:[%s7] sm:$0x1]
    %v1152 = vlaneseq
    %v1153 = vshrl.u32 %v1152, 7
    %v1154 = vsub.s32 0, %v1153
    %v1155 = vrot.slane %v1150, %v1154
    %1157 = vmatprep.subr.bf16.mxu0 0
    %1158 = vmatpush1.bf16.msra.mxu0 %v1142
    %1159 = vmatprep.subr.bf16.mxu0 0
    %1160 = vmatpush1.bf16.msra.mxu0 %v1143
    %1161 = vmatprep.subr.bf16.mxu0 0
    %1162 = vmatpush1.bf16.msra.mxu0 %v1144
    %1163 = vmatprep.subr.bf16.mxu0 0
    %1164 = vmatpush1.bf16.msra.mxu0 %v1145
    %1165 = vmatprep.subr.bf16.mxu0 0
    %1166 = vmatpush1.bf16.msra.mxu0 %v1146
    %1167 = vmatprep.subr.bf16.mxu0 0
    %1168 = vmatpush1.bf16.msra.mxu0 %v1147
    %1169 = vmatprep.subr.bf16.mxu0 0
    %1170 = vmatpush1.bf16.msra.mxu0 %v1148
    %1171 = vmatprep.subr.bf16.mxu0 0
    %1172 = vmatpush1.bf16.msra.mxu0 %v1149
    %1173 = vmatprep.subr.bf16.mxu0 0
    %1174 = vmatpush1.bf16.msra.mxu0 0
    %1175 = vmatprep.subr.bf16.mxu0 0
    %1176 = vmatpush1.bf16.msra.mxu0 0
    %1177 = vmatprep.subr.bf16.mxu0 0
    %1178 = vmatpush1.bf16.msra.mxu0 0
    %1179 = vmatprep.subr.bf16.mxu0 0
    %1180 = vmatpush1.bf16.msra.mxu0 0
    %1181 = vmatprep.subr.bf16.mxu0 0
    %1182 = vmatpush1.bf16.msra.mxu0 0
    %1183 = vmatprep.subr.bf16.mxu0 0
    %1184 = vmatpush1.bf16.msra.mxu0 0
    %1185 = vmatprep.subr.bf16.mxu0 0
    %1186 = vmatpush1.bf16.msra.mxu0 0
    %1187 = vmatprep.subr.bf16.mxu0 0
    %1188 = vmatpush1.bf16.msra.mxu0 0
    %1189 = vmatprep.mubr.bf16.mxu0 0
    %1190 = vmatmul.mubr.bf16.gmra.mrb[0].mxu0 %v182
    %v1191 = vpop.f32.mrb[0].mxu0
    %v1192 = vadd.f32 %v1155, %v1191
    %v1193 = vpop.f32.mrb[0].mxu0
    %v1194 = vpop.f32.mrb[0].mxu0
    %v1195 = vadd.f32 %v1155, %v1194
    %v1196 = vpop.f32.mrb[0].mxu0
    %1197 = vmatprep.mubr.bf16.mxu0 0
    %1198 = vmatmul.mubr.bf16.gmra.mrb[0].mxu0 %v183
    %v1199 = vpop.f32.mrb[0].mxu0
    %v1200 = vadd.f32 %v1155, %v1199
    %v1201 = vpop.f32.mrb[0].mxu0
    %v1202 = vpop.f32.mrb[0].mxu0
    %v1203 = vadd.f32 %v1155, %v1202
    %v1204 = vpop.f32.mrb[0].mxu0
    %1205 = vmatprep.mubr.bf16.mxu0 0
    %1206 = vmatmul.mubr.bf16.gmra.mrb[0].mxu0 %v184
    %v1207 = vpop.f32.mrb[0].mxu0
    %v1208 = vadd.f32 %v1155, %v1207
    %v1209 = vpop.f32.mrb[0].mxu0
    %v1210 = vpop.f32.mrb[0].mxu0
    %v1211 = vadd.f32 %v1155, %v1210
    %v1212 = vpop.f32.mrb[0].mxu0
    %1213 = vmatprep.mubr.bf16.mxu0 0
    %1214 = vmatmul.mubr.bf16.gmra.mrb[0].mxu0 %v185
    %v1215 = vpop.f32.mrb[0].mxu0
    %v1216 = vadd.f32 %v1155, %v1215
    %v1217 = vpop.f32.mrb[0].mxu0
    %v1218 = vpop.f32.mrb[0].mxu0
    %v1219 = vadd.f32 %v1155, %v1218
    %v1220 = vpop.f32.mrb[0].mxu0
    %1221 = vmatprep.mubr.bf16.mxu0 0
    %1222 = vmatmul.mubr.bf16.gmra.mrb[0].mxu0 %v186
    %v1223 = vpop.f32.mrb[0].mxu0
    %v1224 = vadd.f32 %v1155, %v1223
    %v1225 = vpop.f32.mrb[0].mxu0
    %v1226 = vpop.f32.mrb[0].mxu0
    %v1227 = vadd.f32 %v1155, %v1226
    %v1228 = vpop.f32.mrb[0].mxu0
    %1229 = vmatprep.mubr.bf16.mxu0 0
    %1230 = vmatmul.mubr.bf16.gmra.mrb[0].mxu0 %v187
    %v1231 = vpop.f32.mrb[0].mxu0
    %v1232 = vadd.f32 %v1155, %v1231
    %v1233 = vpop.f32.mrb[0].mxu0
    %v1234 = vpop.f32.mrb[0].mxu0
    %v1235 = vadd.f32 %v1155, %v1234
    %v1236 = vpop.f32.mrb[0].mxu0
    %1237 = vmatprep.mubr.bf16.mxu0 0
    %1238 = vmatmul.mubr.bf16.gmra.mrb[0].mxu0 %v188
    %v1239 = vpop.f32.mrb[0].mxu0
    %v1240 = vadd.f32 %v1155, %v1239
    %v1241 = vpop.f32.mrb[0].mxu0
    %v1242 = vpop.f32.mrb[0].mxu0
    %v1243 = vadd.f32 %v1155, %v1242
    %v1244 = vpop.f32.mrb[0].mxu0
    %1245 = vmatprep.mubr.bf16.mxu0 0
    %1246 = vmatmul.mubr.bf16.gmra.mrb[0].mxu0 %v189
    %v1247 = vpop.f32.mrb[0].mxu0
    %v1248 = vadd.f32 %v1155, %v1247
    %v1249 = vpop.f32.mrb[0].mxu0
    %v1250 = vpop.f32.mrb[0].mxu0
    %v1251 = vadd.f32 %v1155, %v1250
    %v1252 = vpop.f32.mrb[0].mxu0
    %1253 = vdwg.mxu0
    %v1254 = vmax.f32 %v1192, 0.0
    %v1255 = vmax.f32 %v1195, 0.0
    %v1256 = vmax.f32 %v1200, 0.0
    %v1257 = vmax.f32 %v1203, 0.0
    %v1258 = vmax.f32 %v1208, 0.0
    %v1259 = vmax.f32 %v1211, 0.0
    %v1260 = vmax.f32 %v1216, 0.0
    %v1261 = vmax.f32 %v1219, 0.0
    %v1262 = vmax.f32 %v1224, 0.0
    %v1263 = vmax.f32 %v1227, 0.0
    %v1264 = vmax.f32 %v1232, 0.0
    %v1265 = vmax.f32 %v1235, 0.0
    %v1266 = vmax.f32 %v1240, 0.0
    %v1267 = vmax.f32 %v1243, 0.0
    %v1268 = vmax.f32 %v1248, 0.0
    %v1269 = vmax.f32 %v1251, 0.0
    %v1270 = vpack.c.bf16 %v1255, %v1254
    %v1271 = vpack.c.bf16 %v1257, %v1256
    %v1272 = vpack.c.bf16 %v1259, %v1258
    %v1273 = vpack.c.bf16 %v1261, %v1260
    %v1274 = vpack.c.bf16 %v1263, %v1262
    %v1275 = vpack.c.bf16 %v1265, %v1264
    %v1276 = vpack.c.bf16 %v1267, %v1266
    %v1277 = vpack.c.bf16 %v1269, %v1268
    %v1278 = vld [vmem:[#allocation10] sm:$0xf]
    %v1279 = vld [vmem:[#allocation10 + $0x4] sm:$0xf]
    %v1280 = vld [vmem:[#allocation10 + $0x8] sm:$0xf]
    %v1281 = vld [vmem:[#allocation10 + $0xc] sm:$0xf]
    %v1282 = vld [vmem:[#allocation10 + $0x10] sm:$0xf]
    %v1283 = vld [vmem:[#allocation10 + $0x14] sm:$0xf]
    %v1284 = vld [vmem:[#allocation10 + $0x18] sm:$0xf]
    %v1285 = vld [vmem:[#allocation10 + $0x1c] sm:$0xf]
    %v1286 = vld [vmem:[#allocation10 + $0x20] sm:$0xf]
    %v1287 = vld [vmem:[#allocation10 + $0x24] sm:$0xf]
    %v1288 = vld [vmem:[#allocation10 + $0x28] sm:$0xf]
    %v1289 = vld [vmem:[#allocation10 + $0x2c] sm:$0xf]
    %v1290 = vld [vmem:[#allocation10 + $0x30] sm:$0xf]
    %v1291 = vld [vmem:[#allocation10 + $0x34] sm:$0xf]
    %v1292 = vld [vmem:[#allocation10 + $0x38] sm:$0xf]
    %v1293 = vld [vmem:[#allocation10 + $0x3c] sm:$0xf]
    %v1310 = vunpack.c.l.b16 %v1278
    %v1311 = vunpack.c.l.b16 %v1279
    %v1312 = vunpack.c.l.b16 %v1280
    %v1313 = vunpack.c.l.b16 %v1281
    %v1314 = vunpack.c.l.b16 %v1282
    %v1315 = vunpack.c.l.b16 %v1283
    %v1316 = vunpack.c.l.b16 %v1284
    %v1317 = vunpack.c.l.b16 %v1285
    %v1318 = vunpack.c.l.b16 %v1286
    %v1319 = vunpack.c.l.b16 %v1287
    %v1320 = vunpack.c.l.b16 %v1288
    %v1321 = vunpack.c.l.b16 %v1289
    %v1322 = vunpack.c.l.b16 %v1290
    %v1323 = vunpack.c.l.b16 %v1291
    %v1324 = vunpack.c.l.b16 %v1292
    %v1325 = vunpack.c.l.b16 %v1293
    %v1326 = vpack.c.b16 %v1311, %v1310
    %v1327 = vpack.c.b16 %v1313, %v1312
    %v1328 = vpack.c.b16 %v1315, %v1314
    %v1329 = vpack.c.b16 %v1317, %v1316
    %v1330 = vpack.c.b16 %v1319, %v1318
    %v1331 = vpack.c.b16 %v1321, %v1320
    %v1332 = vpack.c.b16 %v1323, %v1322
    %v1333 = vpack.c.b16 %v1325, %v1324
    %1342 = vmatprep.subr.bf16.mxu0 0
    %1343 = vmatpush1.bf16.msra.mxu0 %v1326
    %1344 = vmatprep.subr.bf16.mxu0 0
    %1345 = vmatpush1.bf16.msra.mxu0 %v1327
    %1346 = vmatprep.subr.bf16.mxu0 0
    %1347 = vmatpush1.bf16.msra.mxu0 %v1328
    %1348 = vmatprep.subr.bf16.mxu0 0
    %1349 = vmatpush1.bf16.msra.mxu0 %v1329
    %1350 = vmatprep.subr.bf16.mxu0 0
    %1351 = vmatpush1.bf16.msra.mxu0 %v1330
    %1352 = vmatprep.subr.bf16.mxu0 0
    %1353 = vmatpush1.bf16.msra.mxu0 %v1331
    %1354 = vmatprep.subr.bf16.mxu0 0
    %1355 = vmatpush1.bf16.msra.mxu0 %v1332
    %1356 = vmatprep.subr.bf16.mxu0 0
    %1357 = vmatpush1.bf16.msra.mxu0 %v1333
    %1358 = vmatprep.subr.bf16.mxu0 0
    %1359 = vmatpush1.bf16.msra.mxu0 0
    %1360 = vmatprep.subr.bf16.mxu0 0
    %1361 = vmatpush1.bf16.msra.mxu0 0
    %1362 = vmatprep.subr.bf16.mxu0 0
    %1363 = vmatpush1.bf16.msra.mxu0 0
    %1364 = vmatprep.subr.bf16.mxu0 0
    %1365 = vmatpush1.bf16.msra.mxu0 0
    %1366 = vmatprep.subr.bf16.mxu0 0
    %1367 = vmatpush1.bf16.msra.mxu0 0
    %1368 = vmatprep.subr.bf16.mxu0 0
    %1369 = vmatpush1.bf16.msra.mxu0 0
    %1370 = vmatprep.subr.bf16.mxu0 0
    %1371 = vmatpush1.bf16.msra.mxu0 0
    %1372 = vmatprep.subr.bf16.mxu0 0
    %1373 = vmatpush1.bf16.msra.mxu0 0
    %1374 = vmatprep.mubr.bf16.mxu0 0
    %1375 = vmatmul.mubr.bf16.gmra.mrb[0].mxu0 %v1270
    %v1376 = vpop.f32.mrb[0].mxu0
    %v1377 = vadd.f32 0.0, %v1376
    %v1378 = vpop.f32.mrb[0].mxu0
    %v1379 = vpop.f32.mrb[0].mxu0
    %v1380 = vadd.f32 0.0, %v1379
    %v1381 = vpop.f32.mrb[0].mxu0
    %1382 = vmatprep.mubr.bf16.mxu0 0
    %1383 = vmatmul.mubr.bf16.gmra.mrb[0].mxu0 %v1271
    %v1384 = vpop.f32.mrb[0].mxu0
    %v1385 = vadd.f32 0.0, %v1384
    %v1386 = vpop.f32.mrb[0].mxu0
    %v1387 = vpop.f32.mrb[0].mxu0
    %v1388 = vadd.f32 0.0, %v1387
    %v1389 = vpop.f32.mrb[0].mxu0
    %1390 = vmatprep.mubr.bf16.mxu0 0
    %1391 = vmatmul.mubr.bf16.gmra.mrb[0].mxu0 %v1272
    %v1392 = vpop.f32.mrb[0].mxu0
    %v1393 = vadd.f32 0.0, %v1392
    %v1394 = vpop.f32.mrb[0].mxu0
    %v1395 = vpop.f32.mrb[0].mxu0
    %v1396 = vadd.f32 0.0, %v1395
    %v1397 = vpop.f32.mrb[0].mxu0
    %1398 = vmatprep.mubr.bf16.mxu0 0
    %1399 = vmatmul.mubr.bf16.gmra.mrb[0].mxu0 %v1273
    %v1400 = vpop.f32.mrb[0].mxu0
    %v1401 = vadd.f32 0.0, %v1400
    %v1402 = vpop.f32.mrb[0].mxu0
    %v1403 = vpop.f32.mrb[0].mxu0
    %v1404 = vadd.f32 0.0, %v1403
    %v1405 = vpop.f32.mrb[0].mxu0
    %1406 = vmatprep.mubr.bf16.mxu0 0
    %1407 = vmatmul.mubr.bf16.gmra.mrb[0].mxu0 %v1274
    %v1408 = vpop.f32.mrb[0].mxu0
    %v1409 = vadd.f32 0.0, %v1408
    %v1410 = vpop.f32.mrb[0].mxu0
    %v1411 = vpop.f32.mrb[0].mxu0
    %v1412 = vadd.f32 0.0, %v1411
    %v1413 = vpop.f32.mrb[0].mxu0
    %1414 = vmatprep.mubr.bf16.mxu0 0
    %1415 = vmatmul.mubr.bf16.gmra.mrb[0].mxu0 %v1275
    %v1416 = vpop.f32.mrb[0].mxu0
    %v1417 = vadd.f32 0.0, %v1416
    %v1418 = vpop.f32.mrb[0].mxu0
    %v1419 = vpop.f32.mrb[0].mxu0
    %v1420 = vadd.f32 0.0, %v1419
    %v1421 = vpop.f32.mrb[0].mxu0
    %1422 = vmatprep.mubr.bf16.mxu0 0
    %1423 = vmatmul.mubr.bf16.gmra.mrb[0].mxu0 %v1276
    %v1424 = vpop.f32.mrb[0].mxu0
    %v1425 = vadd.f32 0.0, %v1424
    %v1426 = vpop.f32.mrb[0].mxu0
    %v1427 = vpop.f32.mrb[0].mxu0
    %v1428 = vadd.f32 0.0, %v1427
    %v1429 = vpop.f32.mrb[0].mxu0
    %1430 = vmatprep.mubr.bf16.mxu0 0
    %1431 = vmatmul.mubr.bf16.gmra.mrb[0].mxu0 %v1277
    %v1432 = vpop.f32.mrb[0].mxu0
    %v1433 = vadd.f32 0.0, %v1432
    %v1434 = vpop.f32.mrb[0].mxu0
    %v1435 = vpop.f32.mrb[0].mxu0
    %v1436 = vadd.f32 0.0, %v1435
    %v1437 = vpop.f32.mrb[0].mxu0
    %1438 = vdwg.mxu0
    %v1439 = vpack.c.bf16 %v1380, %v1377
    %v1440 = vpack.c.bf16 %v1388, %v1385
    %v1441 = vpack.c.bf16 %v1396, %v1393
    %v1442 = vpack.c.bf16 %v1404, %v1401
    %v1443 = vpack.c.bf16 %v1412, %v1409
    %v1444 = vpack.c.bf16 %v1420, %v1417
    %v1445 = vpack.c.bf16 %v1428, %v1425
    %v1446 = vpack.c.bf16 %v1436, %v1433
    %v1447 = vld [vmem:[%s9] sm:$0x1]
    %v1449 = vlaneseq
    %v1450 = vshrl.u32 %v1449, 7
    %v1451 = vsub.s32 0, %v1450
    %v1452 = vrot.slane %v1447, %v1451
    %1454 = vmatprep.subr.bf16.mxu0 0
    %1455 = vmatpush1.bf16.msra.mxu0 %v1439
    %1456 = vmatprep.subr.bf16.mxu0 0
    %1457 = vmatpush1.bf16.msra.mxu0 %v1440
    %1458 = vmatprep.subr.bf16.mxu0 0
    %1459 = vmatpush1.bf16.msra.mxu0 %v1441
    %1460 = vmatprep.subr.bf16.mxu0 0
    %1461 = vmatpush1.bf16.msra.mxu0 %v1442
    %1462 = vmatprep.subr.bf16.mxu0 0
    %1463 = vmatpush1.bf16.msra.mxu0 %v1443
    %1464 = vmatprep.subr.bf16.mxu0 0
    %1465 = vmatpush1.bf16.msra.mxu0 %v1444
    %1466 = vmatprep.subr.bf16.mxu0 0
    %1467 = vmatpush1.bf16.msra.mxu0 %v1445
    %1468 = vmatprep.subr.bf16.mxu0 0
    %1469 = vmatpush1.bf16.msra.mxu0 %v1446
    %1470 = vmatprep.subr.bf16.mxu0 0
    %1471 = vmatpush1.bf16.msra.mxu0 0
    %1472 = vmatprep.subr.bf16.mxu0 0
    %1473 = vmatpush1.bf16.msra.mxu0 0
    %1474 = vmatprep.subr.bf16.mxu0 0
    %1475 = vmatpush1.bf16.msra.mxu0 0
    %1476 = vmatprep.subr.bf16.mxu0 0
    %1477 = vmatpush1.bf16.msra.mxu0 0
    %1478 = vmatprep.subr.bf16.mxu0 0
    %1479 = vmatpush1.bf16.msra.mxu0 0
    %1480 = vmatprep.subr.bf16.mxu0 0
    %1481 = vmatpush1.bf16.msra.mxu0 0
    %1482 = vmatprep.subr.bf16.mxu0 0
    %1483 = vmatpush1.bf16.msra.mxu0 0
    %1484 = vmatprep.subr.bf16.mxu0 0
    %1485 = vmatpush1.bf16.msra.mxu0 0
    %1486 = vmatprep.mubr.bf16.mxu0 0
    %1487 = vmatmul.mubr.bf16.gmra.mrb[0].mxu0 %v182
    %v1488 = vpop.f32.mrb[0].mxu0
    %v1489 = vadd.f32 %v1452, %v1488
    %v1490 = vpop.f32.mrb[0].mxu0
    %v1491 = vpop.f32.mrb[0].mxu0
    %v1492 = vadd.f32 %v1452, %v1491
    %v1493 = vpop.f32.mrb[0].mxu0
    %1494 = vmatprep.mubr.bf16.mxu0 0
    %1495 = vmatmul.mubr.bf16.gmra.mrb[0].mxu0 %v183
    %v1496 = vpop.f32.mrb[0].mxu0
    %v1497 = vadd.f32 %v1452, %v1496
    %v1498 = vpop.f32.mrb[0].mxu0
    %v1499 = vpop.f32.mrb[0].mxu0
    %v1500 = vadd.f32 %v1452, %v1499
    %v1501 = vpop.f32.mrb[0].mxu0
    %1502 = vmatprep.mubr.bf16.mxu0 0
    %1503 = vmatmul.mubr.bf16.gmra.mrb[0].mxu0 %v184
    %v1504 = vpop.f32.mrb[0].mxu0
    %v1505 = vadd.f32 %v1452, %v1504
    %v1506 = vpop.f32.mrb[0].mxu0
    %v1507 = vpop.f32.mrb[0].mxu0
    %v1508 = vadd.f32 %v1452, %v1507
    %v1509 = vpop.f32.mrb[0].mxu0
    %1510 = vmatprep.mubr.bf16.mxu0 0
    %1511 = vmatmul.mubr.bf16.gmra.mrb[0].mxu0 %v185
    %v1512 = vpop.f32.mrb[0].mxu0
    %v1513 = vadd.f32 %v1452, %v1512
    %v1514 = vpop.f32.mrb[0].mxu0
    %v1515 = vpop.f32.mrb[0].mxu0
    %v1516 = vadd.f32 %v1452, %v1515
    %v1517 = vpop.f32.mrb[0].mxu0
    %1518 = vmatprep.mubr.bf16.mxu0 0
    %1519 = vmatmul.mubr.bf16.gmra.mrb[0].mxu0 %v186
    %v1520 = vpop.f32.mrb[0].mxu0
    %v1521 = vadd.f32 %v1452, %v1520
    %v1522 = vpop.f32.mrb[0].mxu0
    %v1523 = vpop.f32.mrb[0].mxu0
    %v1524 = vadd.f32 %v1452, %v1523
    %v1525 = vpop.f32.mrb[0].mxu0
    %1526 = vmatprep.mubr.bf16.mxu0 0
    %1527 = vmatmul.mubr.bf16.gmra.mrb[0].mxu0 %v187
    %v1528 = vpop.f32.mrb[0].mxu0
    %v1529 = vadd.f32 %v1452, %v1528
    %v1530 = vpop.f32.mrb[0].mxu0
    %v1531 = vpop.f32.mrb[0].mxu0
    %v1532 = vadd.f32 %v1452, %v1531
    %v1533 = vpop.f32.mrb[0].mxu0
    %1534 = vmatprep.mubr.bf16.mxu0 0
    %1535 = vmatmul.mubr.bf16.gmra.mrb[0].mxu0 %v188
    %v1536 = vpop.f32.mrb[0].mxu0
    %v1537 = vadd.f32 %v1452, %v1536
    %v1538 = vpop.f32.mrb[0].mxu0
    %v1539 = vpop.f32.mrb[0].mxu0
    %v1540 = vadd.f32 %v1452, %v1539
    %v1541 = vpop.f32.mrb[0].mxu0
    %1542 = vmatprep.mubr.bf16.mxu0 0
    %1543 = vmatmul.mubr.bf16.gmra.mrb[0].mxu0 %v189
    %v1544 = vpop.f32.mrb[0].mxu0
    %v1545 = vadd.f32 %v1452, %v1544
    %v1546 = vpop.f32.mrb[0].mxu0
    %v1547 = vpop.f32.mrb[0].mxu0
    %v1548 = vadd.f32 %v1452, %v1547
    %v1549 = vpop.f32.mrb[0].mxu0
    %1550 = vdwg.mxu0
    %1551 = vst [vmem:[%s10] sm:$0xff] %v1489
    %1552 = vst [vmem:[%s10 + $0x8] sm:$0xff] %v1492
    %1553 = vst [vmem:[%s10 + $0x10] sm:$0xff] %v1497
    %1554 = vst [vmem:[%s10 + $0x18] sm:$0xff] %v1500
    %1555 = vst [vmem:[%s10 + $0x20] sm:$0xff] %v1505
    %1556 = vst [vmem:[%s10 + $0x28] sm:$0xff] %v1508
    %1557 = vst [vmem:[%s10 + $0x30] sm:$0xff] %v1513
    %1558 = vst [vmem:[%s10 + $0x38] sm:$0xff] %v1516
    %1559 = vst [vmem:[%s10 + $0x40] sm:$0xff] %v1521
    %1560 = vst [vmem:[%s10 + $0x48] sm:$0xff] %v1524
    %1561 = vst [vmem:[%s10 + $0x50] sm:$0xff] %v1529
    %1562 = vst [vmem:[%s10 + $0x58] sm:$0xff] %v1532
    %1563 = vst [vmem:[%s10 + $0x60] sm:$0xff] %v1537
    %1564 = vst [vmem:[%s10 + $0x68] sm:$0xff] %v1540
    %1565 = vst [vmem:[%s10 + $0x70] sm:$0xff] %v1545
    %1566 = vst [vmem:[%s10 + $0x78] sm:$0xff] %v1548
    // Predicated region
    $region66: #{forward.1} parent=1 // pred_check
      _
    $region67: #{forward.1} parent=1 // pred_check_branch
      %1568 = sbr.rel (0) target = $region69
    $region68: #{forward.1} parent=1 // pred_region
      _
    $region69: #{forward.1} parent=1 // pred_fallthru
      _
    // Predicated region
    $region70: #{forward.1} parent=1 // pred_check
      _
    $region71: #{forward.1} parent=1 // pred_check_branch
      %1570 = sbr.rel (0) target = $region73
    $region72: #{forward.1} parent=1 // pred_region
      _
    $region73: #{forward.1} parent=1 // pred_fallthru
      _
    %1571 = vsyncpa [#allocation3], 1
    %1572 = vsyncpa [#allocation5], 1
    %1573 = vsyncpa [#allocation8], 1
    %1574 = vsyncpa [#allocation11], 1

</llo_original>
